<compile_context>
chip_gen: v7x
topology: tpu7x:2x2x1
jax: 0.10.0
libtpu: 0.0.40
codegen_flags: <defaults>
</compile_context>

<pallas_src>
import functools
import math

import jax
import jax.numpy as jnp
from jax.experimental import pallas as pl
from jax.experimental.pallas import tpu as pltpu


def _round_up(x, m):
    return (x + m - 1) // m * m


# ----------------------------- fused per-layer kernel -----------------------------

def gin_layer_kernel(eps_ref, adj_ref, hk_ref, hs_ref, w1t_ref, w2t_ref, ep_ref,
                     o_ref, acc_ref):
    """One fused GIN layer.

    eps_ref : SMEM (1, 1) f32      -> (1 + eps)
    adj_ref : VMEM (tm, tk) bf16   -> adjacency tile
    hk_ref  : VMEM (tk, Din) f32   -> h rows feeding this K tile
    hs_ref  : VMEM (tm, Din) f32   -> h rows of this output tile (self term)
    w1t_ref : VMEM (Din, H) f32    -> W1 pre-transposed
    w2t_ref : VMEM (H, H) f32      -> W2 pre-transposed
    ep_ref  : VMEM (8, H) f32      -> rows [s1, t1', s2, t2', s3, t3, 0, 0]
    o_ref   : VMEM (tm, H) f32
    acc_ref : VMEM (tm, Din) f32   -> running (1+eps)*h + A@h accumulator
    """
    k = pl.program_id(1)

    @pl.when(k == 0)
    def _():
        # seed the accumulator with the (1 + eps) * h self term
        acc_ref[...] = eps_ref[0, 0] * hs_ref[...]

    # sum-pool neighbor aggregation: A @ h (bf16 MXU path, f32 accumulation)
    acc_ref[...] += jnp.dot(adj_ref[...], hk_ref[...].astype(jnp.bfloat16),
                            preferred_element_type=jnp.float32)

    @pl.when(k == pl.num_programs(1) - 1)
    def _():
        m = acc_ref[...]
        # MLP hidden layer: relu(BN_mlp(W1 m + b1))   (bias folded into t1')
        z = jnp.dot(m, w1t_ref[...], preferred_element_type=jnp.float32)
        z = jnp.maximum(z * ep_ref[0:1, :] + ep_ref[1:2, :], 0.0)
        # MLP output + ApplyNodeFunc BN + relu        (bias folded into t2')
        z = jnp.dot(z, w2t_ref[...], preferred_element_type=jnp.float32)
        z = jnp.maximum(z * ep_ref[2:3, :] + ep_ref[3:4, :], 0.0)
        # outer GIN BatchNorm + relu
        o_ref[...] = jnp.maximum(z * ep_ref[4:5, :] + ep_ref[5:6, :], 0.0)


# ----------------------------- pallas_call wrapper ---------------------------------

def _gin_layer(adj_bf16, h, p, tm, tk):
    n_pad, d_in = h.shape
    h_out = p["w1t"].shape[1]
    grid = (n_pad // tm, n_pad // tk)
    return pl.pallas_call(
        gin_layer_kernel,
        out_shape=jax.ShapeDtypeStruct((n_pad, h_out), jnp.float32),
        grid_spec=pltpu.PrefetchScalarGridSpec(
            num_scalar_prefetch=0,
            grid=grid,
            in_specs=[
                # (1 + eps): whole (1,1) array resident in SMEM, not pipelined
                pl.BlockSpec(memory_space=pltpu.MemorySpace.SMEM),
                pl.BlockSpec((tm, tk), lambda i, k: (i, k)),            # A tile
                pl.BlockSpec((tk, d_in), lambda i, k: (k, 0)),          # h (K rows)
                pl.BlockSpec((tm, d_in), lambda i, k: (i, 0)),          # h (self rows)
                pl.BlockSpec((d_in, h_out), lambda i, k: (0, 0)),       # W1^T
                pl.BlockSpec((h_out, h_out), lambda i, k: (0, 0)),      # W2^T
                pl.BlockSpec((8, h_out), lambda i, k: (0, 0)),          # folded BN params
            ],
            out_specs=pl.BlockSpec((tm, h_out), lambda i, k: (i, 0)),
            scratch_shapes=[pltpu.VMEM((tm, d_in), jnp.float32)],
        ),
        compiler_params=pltpu.CompilerParams(
            dimension_semantics=("parallel", "arbitrary")),
    )(p["one_plus_eps"], adj_bf16, h, h, p["w1t"], p["w2t"], p["ep"])


@functools.partial(jax.jit, static_argnames=("hidden_dim", "tm", "tk"))
def gin_forward(adj, h, prepared, *, hidden_dim, tm=256, tk=256):
    n, d_in = h.shape
    d_pad = prepared[0]["w1t"].shape[0]

    n128 = _round_up(n, 128)
    tm = min(tm, n128)
    tk = min(tk, n128)
    n_pad = _round_up(n, math.lcm(tm, tk))

    # pad once per forward; bf16 adjacency is exact for 0/1 entries (cast BEFORE pad
    # so the padded O(N^2) temporary is already half-width)
    adj_p = jnp.pad(adj.astype(jnp.bfloat16), ((0, n_pad - n), (0, n_pad - n)))
    hp = jnp.pad(h.astype(jnp.float32), ((0, n_pad - n), (0, d_pad - d_in)))

    for p in prepared:
        hp = _gin_layer(adj_p, hp, p, tm, tk)

    return hp[:n, :hidden_dim]


# ----------------------------- parameters ------------------------------------------

def _fold_bn(bn, eps=1e-5):
    s = bn["gamma"] * jax.lax.rsqrt(bn["var"] + eps)
    t = bn["beta"] - bn["mean"] * s
    return s, t


def prepare_gin_params(raw_layers, input_dim, hidden_dim, lane=128):
    """Fold BN + biases, pre-transpose weights, pad feature dims to lane width."""
    d_pad = _round_up(input_dim, lane)
    h_pad = _round_up(hidden_dim, lane)
    prepared = []
    for i, p in enumerate(raw_layers):
        din = input_dim if i == 0 else hidden_dim
        din_pad = d_pad if i == 0 else h_pad
        s1, t1 = _fold_bn(p["bn_mlp"])
        t1 = p["b1"] * s1 + t1                       # fold linear1 bias
        s2, t2 = _fold_bn(p["bn_apply"])
        t2 = p["b2"] * s2 + t2                       # fold linear2 bias
        s3, t3 = _fold_bn(p["bn_outer"])

        w1t = jnp.zeros((din_pad, h_pad), jnp.float32).at[:din, :hidden_dim].set(p["w1"].T)
        w2t = jnp.zeros((h_pad, h_pad), jnp.float32).at[:hidden_dim, :hidden_dim].set(p["w2"].T)
        ep = jnp.zeros((8, h_pad), jnp.float32)
        for row, v in enumerate((s1, t1, s2, t2, s3, t3)):
            ep = ep.at[row, :hidden_dim].set(v)

        prepared.append(dict(
            one_plus_eps=(1.0 + p["eps"]).reshape(1, 1).astype(jnp.float32),
            w1t=w1t, w2t=w2t, ep=ep))
    return prepared


def init_gin_raw_params(key, num_layers, input_dim, hidden_dim):
    def bn_init(k, dim):
        ka, kb, kc, kd = jax.random.split(k, 4)
        return dict(
            gamma=1.0 + 0.1 * jax.random.normal(ka, (dim,), jnp.float32),
            beta=0.1 * jax.random.normal(kb, (dim,), jnp.float32),
            mean=0.05 * jax.random.normal(kc, (dim,), jnp.float32),
            var=1.0 + 0.1 * jax.random.uniform(kd, (dim,), jnp.float32),
        )

    layers = []
    for layer in range(num_layers):
        din = input_dim if layer == 0 else hidden_dim
        key, k1, k2, k3, k4, kb1, kb2, kb3, ke = jax.random.split(key, 9)
        layers.append(dict(
            eps=0.1 * jax.random.normal(ke, (), jnp.float32),
            w1=0.1 * jax.random.normal(k1, (hidden_dim, din), jnp.float32),
            b1=0.05 * jax.random.normal(k2, (hidden_dim,), jnp.float32),
            w2=0.1 * jax.random.normal(k3, (hidden_dim, hidden_dim), jnp.float32),
            b2=0.05 * jax.random.normal(k4, (hidden_dim,), jnp.float32),
            bn_mlp=bn_init(kb1, hidden_dim),
            bn_apply=bn_init(kb2, hidden_dim),
            bn_outer=bn_init(kb3, hidden_dim),
        ))
    return layers


# ----------------------------- pure-JAX reference ----------------------------------

def _bn_infer(x, bn, eps=1e-5):
    s = bn["gamma"] * jax.lax.rsqrt(bn["var"] + eps)
    return (x - bn["mean"]) * s + bn["beta"]


def gin_reference(adj, h, raw_layers):
    for p in raw_layers:
        m = (1.0 + p["eps"]) * h + adj @ h
        z = jax.nn.relu(_bn_infer(m @ p["w1"].T + p["b1"], p["bn_mlp"]))
        z = z @ p["w2"].T + p["b2"]
        z = jax.nn.relu(_bn_infer(z, p["bn_apply"]))
        h = jax.nn.relu(_bn_infer(z, p["bn_outer"]))
    return h


# ----------------------------- main -------------------------------------------------

if __name__ == "__main__":
    key = jax.random.PRNGKey(0)

    num_layers = 2
    input_dim = 16
    hidden_dim = 32
    n_nodes = 200          # padded to 256 internally -> exercises a (2, 2) grid

    key, k_adj, k_h, k_p = jax.random.split(key, 4)

    # deterministic random undirected graph, no self loops
    upper = jax.random.bernoulli(k_adj, 0.1, (n_nodes, n_nodes)).astype(jnp.float32)
    adj = jnp.triu(upper, k=1)
    adj = adj + adj.T

    h0 = jax.random.normal(k_h, (n_nodes, input_dim), jnp.float32)

    raw_params = init_gin_raw_params(k_p, num_layers, input_dim, hidden_dim)
    prepared = prepare_gin_params(raw_params, input_dim, hidden_dim)

    out = gin_forward(adj, h0, prepared, hidden_dim=hidden_dim, tm=128, tk=128)
    out = jax.block_until_ready(out)

    assert out.shape == (n_nodes, hidden_dim)
    assert bool(jnp.all(jnp.isfinite(out)))

    # check against the pure-JAX reference (loose tolerance: h is cast to bf16 for
    # the A @ h matmul; adjacency is exact in bf16, accumulation is f32)
    ref = gin_reference(adj, h0, raw_params)
    err = float(jnp.max(jnp.abs(out - ref)))
    scale = float(jnp.max(jnp.abs(ref))) + 1e-6
    assert err / scale < 5e-2, f"relative error too large: {err / scale}"

    print("KERNEL_OK")
</pallas_src>

<mosaic_0001>
module attributes {stable_mosaic.version = 11 : i64} {
  func.func @gin_layer_kernel(%arg0: i32, %arg1: i32, %arg2: memref<1x1xf32, #tpu.memory_space<smem>>, %arg3: memref<128x128xbf16, #tpu.memory_space<vmem>>, %arg4: memref<128x128xf32, #tpu.memory_space<vmem>>, %arg5: memref<128x128xf32, #tpu.memory_space<vmem>>, %arg6: memref<128x128xf32, #tpu.memory_space<vmem>>, %arg7: memref<128x128xf32, #tpu.memory_space<vmem>>, %arg8: memref<8x128xf32, #tpu.memory_space<vmem>>, %arg9: memref<128x128xf32, #tpu.memory_space<vmem>>, %arg10: memref<128x128xf32, #tpu.memory_space<vmem>>) attributes {dimension_semantics = [#tpu.dimension_semantics<parallel>, #tpu.dimension_semantics<arbitrary>], iteration_bounds = array<i64: 2, 2>, scalar_prefetch = 0 : i64, scratch_operands = 1 : i64, tpu.core_type = #tpu.core_type<tc>, window_params = [{transform_indices = @transform_0, window_bounds = array<i64: 1, 1>}, {transform_indices = @transform_1, window_bounds = array<i64: 128, 128>}, {transform_indices = @transform_2, window_bounds = array<i64: 128, 128>}, {transform_indices = @transform_3, window_bounds = array<i64: 128, 128>}, {pipeline_mode = #tpu.pipeline_mode<synchronous>, transform_indices = @transform_4, window_bounds = array<i64: 128, 128>}, {pipeline_mode = #tpu.pipeline_mode<synchronous>, transform_indices = @transform_5, window_bounds = array<i64: 128, 128>}, {pipeline_mode = #tpu.pipeline_mode<synchronous>, transform_indices = @transform_6, window_bounds = array<i64: 8, 128>}, {transform_indices = @transform_7, window_bounds = array<i64: 128, 128>}]} {
    %c0_i32 = arith.constant 0 : i32
    %0 = arith.cmpi eq, %arg1, %c0_i32 : i32
    %1 = arith.extui %0 : i1 to i32
    %c0_i32_0 = arith.constant 0 : i32
    %2 = arith.cmpi ne, %1, %c0_i32_0 : i32
    scf.if %2 {
      %c0_9 = arith.constant 0 : index
      %c0_10 = arith.constant 0 : index
      %13 = memref.load %arg2[%c0_9, %c0_10] : memref<1x1xf32, #tpu.memory_space<smem>>
      %c0_11 = arith.constant 0 : index
      %c0_12 = arith.constant 0 : index
      %14 = vector.load %arg5[%c0_11, %c0_12] : memref<128x128xf32, #tpu.memory_space<vmem>>, vector<128x128xf32>
      %15 = vector.broadcast %13 : f32 to vector<128x128xf32>
      %16 = arith.mulf %15, %14 : vector<128x128xf32>
      %c0_13 = arith.constant 0 : index
      %c0_14 = arith.constant 0 : index
      %17 = vector.load %arg10[%c0_13, %c0_14] : memref<128x128xf32, #tpu.memory_space<vmem>>, vector<128x128xf32>
      tpu.vector_store %arg10[%c0_13, %c0_14], %16 {strides = array<i32>} : memref<128x128xf32, #tpu.memory_space<vmem>>, vector<128x128xf32>,
    } else {
    }
    %c0 = arith.constant 0 : index
    %c0_1 = arith.constant 0 : index
    %3 = vector.load %arg10[%c0, %c0_1] : memref<128x128xf32, #tpu.memory_space<vmem>>, vector<128x128xf32>
    %c0_2 = arith.constant 0 : index
    %c0_3 = arith.constant 0 : index
    %4 = vector.load %arg3[%c0_2, %c0_3] : memref<128x128xbf16, #tpu.memory_space<vmem>>, vector<128x128xbf16>
    %c0_4 = arith.constant 0 : index
    %c0_5 = arith.constant 0 : index
    %5 = vector.load %arg4[%c0_4, %c0_5] : memref<128x128xf32, #tpu.memory_space<vmem>>, vector<128x128xf32>
    %6 = arith.truncf %5 : vector<128x128xf32> to vector<128x128xbf16>
    %cst = arith.constant dense<0.000000e+00> : vector<128x128xf32>
    %7 = tpu.matmul %4, %6, %cst {dimension_numbers = #tpu.dot_dimension_numbers<[1], [0], [0], [1], [0, 0, 1, 1], [], []>} : vector<128x128xbf16>, vector<128x128xbf16>, vector<128x128xf32> -> vector<128x128xf32>
    %8 = arith.addf %3, %7 : vector<128x128xf32>
    %c0_6 = arith.constant 0 : index
    %c0_7 = arith.constant 0 : index
    %9 = vector.load %arg10[%c0_6, %c0_7] : memref<128x128xf32, #tpu.memory_space<vmem>>, vector<128x128xf32>
    tpu.vector_store %arg10[%c0_6, %c0_7], %8 {strides = array<i32>} : memref<128x128xf32, #tpu.memory_space<vmem>>, vector<128x128xf32>,
    %c1_i32 = arith.constant 1 : i32
    %10 = arith.cmpi eq, %arg1, %c1_i32 : i32
    %11 = arith.extui %10 : i1 to i32
    %c0_i32_8 = arith.constant 0 : i32
    %12 = arith.cmpi ne, %11, %c0_i32_8 : i32
    scf.if %12 {
      %c0_9 = arith.constant 0 : index
      %c0_10 = arith.constant 0 : index
      %13 = vector.load %arg10[%c0_9, %c0_10] : memref<128x128xf32, #tpu.memory_space<vmem>>, vector<128x128xf32>
      %c0_11 = arith.constant 0 : index
      %c0_12 = arith.constant 0 : index
      %14 = vector.load %arg6[%c0_11, %c0_12] : memref<128x128xf32, #tpu.memory_space<vmem>>, vector<128x128xf32>
      %cst_13 = arith.constant dense<0.000000e+00> : vector<128x128xf32>
      %15 = tpu.matmul %13, %14, %cst_13 {dimension_numbers = #tpu.dot_dimension_numbers<[1], [0], [0], [1], [0, 0, 1, 1], [], []>} : vector<128x128xf32>, vector<128x128xf32>, vector<128x128xf32> -> vector<128x128xf32>
      %c0_14 = arith.constant 0 : index
      %c0_15 = arith.constant 0 : index
      %16 = vector.load %arg8[%c0_14, %c0_15] : memref<8x128xf32, #tpu.memory_space<vmem>>, vector<1x128xf32>
      %17 = vector.broadcast %16 : vector<1x128xf32> to vector<128x128xf32>
      %18 = arith.mulf %15, %17 : vector<128x128xf32>
      %c1 = arith.constant 1 : index
      %c0_16 = arith.constant 0 : index
      %19 = vector.load %arg8[%c1, %c0_16] : memref<8x128xf32, #tpu.memory_space<vmem>>, vector<1x128xf32>
      %20 = vector.broadcast %19 : vector<1x128xf32> to vector<128x128xf32>
      %21 = arith.addf %18, %20 : vector<128x128xf32>
      %cst_17 = arith.constant 0.000000e+00 : f32
      %22 = vector.broadcast %cst_17 : f32 to vector<128x128xf32>
      %23 = arith.maximumf %21, %22 : vector<128x128xf32>
      %c0_18 = arith.constant 0 : index
      %c0_19 = arith.constant 0 : index
      %24 = vector.load %arg7[%c0_18, %c0_19] : memref<128x128xf32, #tpu.memory_space<vmem>>, vector<128x128xf32>
      %cst_20 = arith.constant dense<0.000000e+00> : vector<128x128xf32>
      %25 = tpu.matmul %23, %24, %cst_20 {dimension_numbers = #tpu.dot_dimension_numbers<[1], [0], [0], [1], [0, 0, 1, 1], [], []>} : vector<128x128xf32>, vector<128x128xf32>, vector<128x128xf32> -> vector<128x128xf32>
      %c2 = arith.constant 2 : index
      %c0_21 = arith.constant 0 : index
      %26 = vector.load %arg8[%c2, %c0_21] : memref<8x128xf32, #tpu.memory_space<vmem>>, vector<1x128xf32>
      %27 = vector.broadcast %26 : vector<1x128xf32> to vector<128x128xf32>
      %28 = arith.mulf %25, %27 : vector<128x128xf32>
      %c3 = arith.constant 3 : index
      %c0_22 = arith.constant 0 : index
      %29 = vector.load %arg8[%c3, %c0_22] : memref<8x128xf32, #tpu.memory_space<vmem>>, vector<1x128xf32>
      %30 = vector.broadcast %29 : vector<1x128xf32> to vector<128x128xf32>
      %31 = arith.addf %28, %30 : vector<128x128xf32>
      %cst_23 = arith.constant 0.000000e+00 : f32
      %32 = vector.broadcast %cst_23 : f32 to vector<128x128xf32>
      %33 = arith.maximumf %31, %32 : vector<128x128xf32>
      %c4 = arith.constant 4 : index
      %c0_24 = arith.constant 0 : index
      %34 = vector.load %arg8[%c4, %c0_24] : memref<8x128xf32, #tpu.memory_space<vmem>>, vector<1x128xf32>
      %35 = vector.broadcast %34 : vector<1x128xf32> to vector<128x128xf32>
      %36 = arith.mulf %33, %35 : vector<128x128xf32>
      %c5 = arith.constant 5 : index
      %c0_25 = arith.constant 0 : index
      %37 = vector.load %arg8[%c5, %c0_25] : memref<8x128xf32, #tpu.memory_space<vmem>>, vector<1x128xf32>
      %38 = vector.broadcast %37 : vector<1x128xf32> to vector<128x128xf32>
      %39 = arith.addf %36, %38 : vector<128x128xf32>
      %cst_26 = arith.constant 0.000000e+00 : f32
      %40 = vector.broadcast %cst_26 : f32 to vector<128x128xf32>
      %41 = arith.maximumf %39, %40 : vector<128x128xf32>
      %c0_27 = arith.constant 0 : index
      %c0_28 = arith.constant 0 : index
      %42 = vector.load %arg9[%c0_27, %c0_28] : memref<128x128xf32, #tpu.memory_space<vmem>>, vector<128x128xf32>
      tpu.vector_store %arg9[%c0_27, %c0_28], %41 {strides = array<i32>} : memref<128x128xf32, #tpu.memory_space<vmem>>, vector<128x128xf32>,
    } else {
    }
    return
  }
  func.func @transform_0(%arg0: i32, %arg1: i32) -> (i32, i32) {
    %c0_i32 = arith.constant 0 : i32
    %c0_i32_0 = arith.constant 0 : i32
    %c0_i32_1 = arith.constant 0 : i32
    return %c0_i32, %c0_i32_0 : i32, i32
  }
  func.func @transform_1(%arg0: i32, %arg1: i32) -> (i32, i32) {
    %c0_i32 = arith.constant 0 : i32
    return %arg0, %arg1 : i32, i32
  }
  func.func @transform_2(%arg0: i32, %arg1: i32) -> (i32, i32) {
    %c0_i32 = arith.constant 0 : i32
    %c0_i32_0 = arith.constant 0 : i32
    return %arg1, %c0_i32 : i32, i32
  }
  func.func @transform_3(%arg0: i32, %arg1: i32) -> (i32, i32) {
    %c0_i32 = arith.constant 0 : i32
    %c0_i32_0 = arith.constant 0 : i32
    return %arg0, %c0_i32 : i32, i32
  }
  func.func @transform_4(%arg0: i32, %arg1: i32) -> (i32, i32) {
    %c0_i32 = arith.constant 0 : i32
    %c0_i32_0 = arith.constant 0 : i32
    %c0_i32_1 = arith.constant 0 : i32
    return %c0_i32, %c0_i32_0 : i32, i32
  }
  func.func @transform_5(%arg0: i32, %arg1: i32) -> (i32, i32) {
    %c0_i32 = arith.constant 0 : i32
    %c0_i32_0 = arith.constant 0 : i32
    %c0_i32_1 = arith.constant 0 : i32
    return %c0_i32, %c0_i32_0 : i32, i32
  }
  func.func @transform_6(%arg0: i32, %arg1: i32) -> (i32, i32) {
    %c0_i32 = arith.constant 0 : i32
    %c0_i32_0 = arith.constant 0 : i32
    %c0_i32_1 = arith.constant 0 : i32
    return %c0_i32, %c0_i32_0 : i32, i32
  }
  func.func @transform_7(%arg0: i32, %arg1: i32) -> (i32, i32) {
    %c0_i32 = arith.constant 0 : i32
    %c0_i32_0 = arith.constant 0 : i32
    return %arg0, %c0_i32 : i32, i32
  }
}

</mosaic_0001>

<llo_original>
// kernel: gin_forward.2
$region0: #{gin_forward.2}
  #allocation0 [shape = 'u32[]', space=smem, size = 0x4, offset = 0x4, fixed_abs, tag = 'smem constant byte address 0x4 - core index']
  #allocation1 [shape = 'u32[144,128]{1,0:T(1,128)}', space=vmem, size = 0x12000, scoped, tag = 'internal scratch']
  #allocation2 [shape = 'f32[128,128]{1,0:T(8,128)}', space=vmem, size = 0x10000, scoped, tag = 'scratch operand']
  #allocation3 [shape = 'f32[1,1]{1,0:T(1,128)S(6)}', space=smem, size = 0x200, scoped, tag = 'scoped memory for gin_forward.2']
  %s0 = inlined_call_operand.<no memory space> [shape: f32[1,1], index: 0, kind: input, shape index: {}]
  %s1 = inlined_call_operand.vmem [shape: bf16[256,256], index: 1, kind: input, shape index: {}]
  %s2 = inlined_call_operand.vmem [shape: f32[256,128], index: 2, kind: input, shape index: {}, may-alias: {2,3}]
  %s3 = inlined_call_operand.vmem [shape: f32[256,128], index: 3, kind: input, shape index: {}, may-alias: {2,3}]
  %s4 = inlined_call_operand.vmem [shape: f32[128,128], index: 4, kind: input, shape index: {}]
  %s5 = inlined_call_operand.vmem [shape: f32[128,128], index: 5, kind: input, shape index: {}]
  %s6 = inlined_call_operand.vmem [shape: f32[8,128], index: 6, kind: input, shape index: {}]
  %s7 = inlined_call_operand.vmem [shape: f32[256,128], index: 7, kind: output, shape index: {}]
  %s8 = sld [smem:[#allocation0]]
  $region110: #{gin_forward.2} parent=0
    _
  %s10 = ssub.s32 1, %s8
  %s11 = scalar_select 0, %s10, %s8
  %12 = sst [smem:[#allocation3]] %s0
  $region1: #{gin_forward.2} parent=0
    #allocation4 [shape = 'u8[65536]{0}', space=vmem, size = 0x10000, scoped, tag = 'input window, operand 1']
    loop: start=0, step=1, limit=6
    $region2: #{gin_forward.2} parent=1 // loop_pre_header
      _
    $region3: #{gin_forward.2} parent=1 // loop_header
      %s14 = sphi 0, %s18
      %p15 = scmp.ge.s32.totalorder %s14, 6
      %s21 = sphi 0, %s33
      %s22 = sphi 0, %s29
      %s23 = sphi 0, %s21
      %s24 = sphi 0, %s22
      %s25 = sphi 0, %s23
      %s26 = sphi 0, %s24
      %s34 = sphi 0, %s34
      %s36 = sphi 0, %s34
      %s37 = sphi 0, %s36
      %s51 = sphi 0, %s37
      %s59 = sphi 0, %s61
      %s62 = sphi 0, %s59
      %s63 = sphi 0, %s62
      %s79 = sphi 0, %s63
      %s85 = sphi 0, %s87
      %s88 = sphi 0, %s85
      %s89 = sphi 0, %s88
      %s105 = sphi 0, %s89
      %s111 = sphi 0, %s113
      %s114 = sphi 0, %s111
      %s115 = sphi 0, %s114
      %s131 = sphi 0, %s115
      %s135 = sphi 0, %s135
      %s137 = sphi 0, %s135
      %s138 = sphi 0, %s137
      %s152 = sphi 0, %s138
      %s156 = sphi 0, %s156
      %s158 = sphi 0, %s156
      %s159 = sphi 0, %s158
      %s173 = sphi 0, %s159
      %s177 = sphi 0, %s177
      %s179 = sphi 0, %s177
      %s180 = sphi 0, %s179
      %s194 = sphi 0, %s180
      %s200 = sphi 0, %s202
      %s203 = sphi 0, %s200
      %s204 = sphi 0, %s203
      %s220 = sphi 0, %s204
    $region4: #{gin_forward.2} parent=1 // loop_header_branch
      %17 = sbr.rel (%p15) target = $region8
    $region5: #{gin_forward.2} parent=1 // loop_body
      %s19 = ssub.s32 %s14, 1
      %s20 = ssub.s32 %s14, 2
      %s27 = sadd.s32 1, %s22
      %p28 = scmp.ge.s32.totalorder %s27, 2
      %s29 = scalar_select %p28, 0, %s27
      %s30 = sadd.s32 1, %s21
      %s31 = scalar_select %p28, %s30, %s21
      %p32 = scmp.ge.s32.totalorder %s31, 2
      %s33 = scalar_select %p32, 0, %s31
      %s35 = sadd.s32 %s34, 1
      %p38 = scmp.eq.s32.totalorder %s14, 3
      %p39 = scmp.ne.s32.totalorder %s34, %s36
      %p40 = scmp.eq.s32.totalorder %s14, 0
      %p41 = por %p39, %p40
      %p42 = scmp.ne.s32.totalorder %s34, %s36
      %p43 = scmp.eq.s32.totalorder %s19, 3
      %p44 = por %p42, %p43
      %p45 = scmp.ne.s32.totalorder %s36, %s37
      %p46 = scmp.eq.s32.totalorder %s19, 0
      %p47 = por %p45, %p46
      %p48 = scmp.ne.s32.totalorder %s36, %s37
      %p49 = scmp.eq.s32.totalorder %s20, 3
      %p50 = por %p48, %p49
      %p52 = scmp.ne.s32.totalorder %s37, %s51
      %p53 = scmp.eq.s32.totalorder %s20, 0
      %p54 = por %p52, %p53
      %s55 = ssub.s32 %s21, %s33
      %s56 = ssub.s32 %s22, %s29
      %s57 = sor.u32 %s55, %s56
      %p58 = scmp.eq.s32.totalorder %s57, 0
      %s60 = sadd.s32 %s59, 1
      %s61 = scalar_select %p58, %s59, %s60
      %p64 = pneg %p58
      %p65 = scmp.eq.s32.totalorder %s14, 3
      %p66 = por %p64, %p65
      %p67 = scmp.ne.s32.totalorder %s59, %s62
      %p68 = scmp.eq.s32.totalorder %s14, 0
      %p69 = por %p67, %p68
      %p70 = scmp.ne.s32.totalorder %s59, %s62
      %p71 = scmp.eq.s32.totalorder %s19, 3
      %p72 = por %p70, %p71
      %p73 = scmp.ne.s32.totalorder %s62, %s63
      %p74 = scmp.eq.s32.totalorder %s19, 0
      %p75 = por %p73, %p74
      %p76 = scmp.ne.s32.totalorder %s62, %s63
      %p77 = scmp.eq.s32.totalorder %s20, 3
      %p78 = por %p76, %p77
      %p80 = scmp.ne.s32.totalorder %s63, %s79
      %p81 = scmp.eq.s32.totalorder %s20, 0
      %p82 = por %p80, %p81
      %s83 = ssub.s32 %s22, %s29
      %p84 = scmp.eq.s32.totalorder %s83, 0
      %s86 = sadd.s32 %s85, 1
      %s87 = scalar_select %p84, %s85, %s86
      %p90 = pneg %p84
      %p91 = scmp.eq.s32.totalorder %s14, 3
      %p92 = por %p90, %p91
      %p93 = scmp.ne.s32.totalorder %s85, %s88
      %p94 = scmp.eq.s32.totalorder %s14, 0
      %p95 = por %p93, %p94
      %p96 = scmp.ne.s32.totalorder %s85, %s88
      %p97 = scmp.eq.s32.totalorder %s19, 3
      %p98 = por %p96, %p97
      %p99 = scmp.ne.s32.totalorder %s88, %s89
      %p100 = scmp.eq.s32.totalorder %s19, 0
      %p101 = por %p99, %p100
      %p102 = scmp.ne.s32.totalorder %s88, %s89
      %p103 = scmp.eq.s32.totalorder %s20, 3
      %p104 = por %p102, %p103
      %p106 = scmp.ne.s32.totalorder %s89, %s105
      %p107 = scmp.eq.s32.totalorder %s20, 0
      %p108 = por %p106, %p107
      %s109 = ssub.s32 %s21, %s33
      %p110 = scmp.eq.s32.totalorder %s109, 0
      %s112 = sadd.s32 %s111, 1
      %s113 = scalar_select %p110, %s111, %s112
      %p116 = pneg %p110
      %p117 = scmp.eq.s32.totalorder %s14, 3
      %p118 = por %p116, %p117
      %p119 = scmp.ne.s32.totalorder %s111, %s114
      %p120 = scmp.eq.s32.totalorder %s14, 0
      %p121 = por %p119, %p120
      %p122 = scmp.ne.s32.totalorder %s111, %s114
      %p123 = scmp.eq.s32.totalorder %s19, 3
      %p124 = por %p122, %p123
      %p125 = scmp.ne.s32.totalorder %s114, %s115
      %p126 = scmp.eq.s32.totalorder %s19, 0
      %p127 = por %p125, %p126
      %p128 = scmp.ne.s32.totalorder %s114, %s115
      %p129 = scmp.eq.s32.totalorder %s20, 3
      %p130 = por %p128, %p129
      %p132 = scmp.ne.s32.totalorder %s115, %s131
      %p133 = scmp.eq.s32.totalorder %s20, 0
      %p134 = por %p132, %p133
      %s136 = sadd.s32 %s135, 1
      %p139 = scmp.eq.s32.totalorder %s14, 3
      %p140 = scmp.ne.s32.totalorder %s135, %s137
      %p141 = scmp.eq.s32.totalorder %s14, 0
      %p142 = por %p140, %p141
      %p143 = scmp.ne.s32.totalorder %s135, %s137
      %p144 = scmp.eq.s32.totalorder %s19, 3
      %p145 = por %p143, %p144
      %p146 = scmp.ne.s32.totalorder %s137, %s138
      %p147 = scmp.eq.s32.totalorder %s19, 0
      %p148 = por %p146, %p147
      %p149 = scmp.ne.s32.totalorder %s137, %s138
      %p150 = scmp.eq.s32.totalorder %s20, 3
      %p151 = por %p149, %p150
      %p153 = scmp.ne.s32.totalorder %s138, %s152
      %p154 = scmp.eq.s32.totalorder %s20, 0
      %p155 = por %p153, %p154
      %s157 = sadd.s32 %s156, 1
      %p160 = scmp.eq.s32.totalorder %s14, 3
      %p161 = scmp.ne.s32.totalorder %s156, %s158
      %p162 = scmp.eq.s32.totalorder %s14, 0
      %p163 = por %p161, %p162
      %p164 = scmp.ne.s32.totalorder %s156, %s158
      %p165 = scmp.eq.s32.totalorder %s19, 3
      %p166 = por %p164, %p165
      %p167 = scmp.ne.s32.totalorder %s158, %s159
      %p168 = scmp.eq.s32.totalorder %s19, 0
      %p169 = por %p167, %p168
      %p170 = scmp.ne.s32.totalorder %s158, %s159
      %p171 = scmp.eq.s32.totalorder %s20, 3
      %p172 = por %p170, %p171
      %p174 = scmp.ne.s32.totalorder %s159, %s173
      %p175 = scmp.eq.s32.totalorder %s20, 0
      %p176 = por %p174, %p175
      %s178 = sadd.s32 %s177, 1
      %p181 = scmp.eq.s32.totalorder %s14, 3
      %p182 = scmp.ne.s32.totalorder %s177, %s179
      %p183 = scmp.eq.s32.totalorder %s14, 0
      %p184 = por %p182, %p183
      %p185 = scmp.ne.s32.totalorder %s177, %s179
      %p186 = scmp.eq.s32.totalorder %s19, 3
      %p187 = por %p185, %p186
      %p188 = scmp.ne.s32.totalorder %s179, %s180
      %p189 = scmp.eq.s32.totalorder %s19, 0
      %p190 = por %p188, %p189
      %p191 = scmp.ne.s32.totalorder %s179, %s180
      %p192 = scmp.eq.s32.totalorder %s20, 3
      %p193 = por %p191, %p192
      %p195 = scmp.ne.s32.totalorder %s180, %s194
      %p196 = scmp.eq.s32.totalorder %s20, 0
      %p197 = por %p195, %p196
      %s198 = ssub.s32 %s21, %s33
      %p199 = scmp.eq.s32.totalorder %s198, 0
      %s201 = sadd.s32 %s200, 1
      %s202 = scalar_select %p199, %s200, %s201
      %p205 = pneg %p199
      %p206 = scmp.eq.s32.totalorder %s14, 3
      %p207 = por %p205, %p206
      %p208 = scmp.ne.s32.totalorder %s200, %s203
      %p209 = scmp.eq.s32.totalorder %s14, 0
      %p210 = por %p208, %p209
      %p211 = scmp.ne.s32.totalorder %s200, %s203
      %p212 = scmp.eq.s32.totalorder %s19, 3
      %p213 = por %p211, %p212
      %p214 = scmp.ne.s32.totalorder %s203, %s204
      %p215 = scmp.eq.s32.totalorder %s19, 0
      %p216 = por %p214, %p215
      %p217 = scmp.ne.s32.totalorder %s203, %s204
      %p218 = scmp.eq.s32.totalorder %s20, 3
      %p219 = por %p217, %p218
      %p221 = scmp.ne.s32.totalorder %s204, %s220
      %p222 = scmp.eq.s32.totalorder %s20, 0
      %p223 = por %p221, %p222
      %p224 = scmp.le.s32.totalorder 1, %s14
      %p225 = scmp.lt.s32.totalorder %s14, 5
      %p226 = pnand %p224, %p225
      %p227 = pneg %p226
      // Predicated region
      $region9: #{gin_forward.2} parent=5 // pred_check
        _
      $region10: #{gin_forward.2} parent=5 // pred_check_branch
        %229 = sbr.rel (%p226) target = $region12
      $region11: #{gin_forward.2} parent=5 // pred_region
        %s230 = ssub.s32 %s14, 1
        // Predicated region
        $region13: #{gin_forward.2} parent=11 // pred_check
          %p231 = pneg %p47
        $region14: #{gin_forward.2} parent=11 // pred_check_branch
          %233 = sbr.rel (%p231) target = $region16
        $region15: #{gin_forward.2} parent=11 // pred_region
          _
        $region16: #{gin_forward.2} parent=11 // pred_fallthru
          _
        // Predicated region
        $region17: #{gin_forward.2} parent=11 // pred_check
          %p234 = pneg %p148
        $region18: #{gin_forward.2} parent=11 // pred_check_branch
          %236 = sbr.rel (%p234) target = $region20
        $region19: #{gin_forward.2} parent=11 // pred_region
          _
        $region20: #{gin_forward.2} parent=11 // pred_fallthru
          _
        // Predicated region
        $region21: #{gin_forward.2} parent=11 // pred_check
          %p237 = pneg %p169
        $region22: #{gin_forward.2} parent=11 // pred_check_branch
          %239 = sbr.rel (%p237) target = $region24
        $region23: #{gin_forward.2} parent=11 // pred_region
          _
        $region24: #{gin_forward.2} parent=11 // pred_fallthru
          _
        // Predicated region
        $region25: #{gin_forward.2} parent=11 // pred_check
          %p240 = pneg %p190
        $region26: #{gin_forward.2} parent=11 // pred_check_branch
          %242 = sbr.rel (%p240) target = $region28
        $region27: #{gin_forward.2} parent=11 // pred_region
          _
        $region28: #{gin_forward.2} parent=11 // pred_fallthru
          _
      $region12: #{gin_forward.2} parent=5 // pred_fallthru
        _
      %p243 = scmp.lt.s32.totalorder %s14, 4
      // Predicated region
      $region29: #{gin_forward.2} parent=5 // pred_check
        %p244 = pneg %p243
      $region30: #{gin_forward.2} parent=5 // pred_check_branch
        %246 = sbr.rel (%p244) target = $region32
      $region31: #{gin_forward.2} parent=5 // pred_region
        // Predicated region
        $region33: #{gin_forward.2} parent=31 // pred_check
          %p247 = pneg %p69
        $region34: #{gin_forward.2} parent=31 // pred_check_branch
          %249 = sbr.rel (%p247) target = $region36
        $region35: #{gin_forward.2} parent=31 // pred_region
          %s250 = sand.u32 %s59, 1
          %s251 = sand.u32 %s59, 1
          %s252 = smul.addr %s251, 64
          %s253 = scalar_lea.vmem [#allocation4], %s252
          %s254 = smul.u32 16, %s21
          %s255 = smul.addr %s254, 2
          %s256 = sadd.s32 %s22, %s255
          %s257 = smul.addr %s256, 4
          %s258 = scalar_lea.vmem %s1, %s257
          // Predicated region
          $region37: #{gin_forward.2} parent=35 // pred_check
            _
          $region38: #{gin_forward.2} parent=35 // pred_check_branch
            %260 = sbr.rel (0) target = $region40
          $region39: #{gin_forward.2} parent=35 // pred_region
            // Predicated region
            $region41: #{gin_forward.2} parent=39 // pred_check
              _
            $region42: #{gin_forward.2} parent=39 // pred_check_branch
              %262 = sbr.rel target = $region44
            $region43: #{gin_forward.2} parent=39 // pred_region
              // Predicated region
              $region56: #{gin_forward.2} parent=43 // pred_check
                _
              $region57: #{gin_forward.2} parent=43 // pred_check_branch
                %307 = sbr.rel (0) target = $region59
              $region58: #{gin_forward.2} parent=43 // pred_region
                loop: start=0, step=1, limit=1
                $region60: #{gin_forward.2} parent=58 // loop_pre_header
                  _
                $region61: #{gin_forward.2} parent=58 // loop_header
                  %s309 = sphi 0, %s313
                  %p310 = scmp.ge.s32.totalorder %s309, 1
                  %s314 = sphi %s258, %s258
                  %s315 = sphi %s253, %s253
                $region62: #{gin_forward.2} parent=58 // loop_header_branch
                  %312 = sbr.rel (%p310) target = $region66
                $region63: #{gin_forward.2} parent=58 // loop_body
                  _
                $region64: #{gin_forward.2} parent=58 // loop_footer
                  %s313 = sadd.s32 1, %s309
                $region65: #{gin_forward.2} parent=58 // loop_footer_branch
                  %308 = sbr.rel target = $region61
                $region66: #{gin_forward.2} parent=58 // loop_exit
                  _
                loop: start=0, step=1, limit=1
                $region67: #{gin_forward.2} parent=58 // loop_pre_header
                  _
                $region68: #{gin_forward.2} parent=58 // loop_header
                  %s318 = sphi 0, %s322
                  %p319 = scmp.ge.s32.totalorder %s318, 1
                  %s323 = sphi %s258, %s258
                  %s324 = sphi %s253, %s253
                $region69: #{gin_forward.2} parent=58 // loop_header_branch
                  %321 = sbr.rel (%p319) target = $region73
                $region70: #{gin_forward.2} parent=58 // loop_body
                  %v325 = vld [vmem:[%s323] sm:$0xf]
                  %326 = vst [vmem:[%s324] sm:$0xf] %v325
                  %v327 = vld [vmem:[%s323 + $0x8] sm:$0xf]
                  %328 = vst [vmem:[%s324 + $0x4] sm:$0xf] %v327
                  %v329 = vld [vmem:[%s323 + $0x10] sm:$0xf]
                  %330 = vst [vmem:[%s324 + $0x8] sm:$0xf] %v329
                  %v331 = vld [vmem:[%s323 + $0x18] sm:$0xf]
                  %332 = vst [vmem:[%s324 + $0xc] sm:$0xf] %v331
                  %v333 = vld [vmem:[%s323 + $0x20] sm:$0xf]
                  %334 = vst [vmem:[%s324 + $0x10] sm:$0xf] %v333
                  %v335 = vld [vmem:[%s323 + $0x28] sm:$0xf]
                  %336 = vst [vmem:[%s324 + $0x14] sm:$0xf] %v335
                  %v337 = vld [vmem:[%s323 + $0x30] sm:$0xf]
                  %338 = vst [vmem:[%s324 + $0x18] sm:$0xf] %v337
                  %v339 = vld [vmem:[%s323 + $0x38] sm:$0xf]
                  %340 = vst [vmem:[%s324 + $0x1c] sm:$0xf] %v339
                  %v341 = vld [vmem:[%s323 + $0x40] sm:$0xf]
                  %342 = vst [vmem:[%s324 + $0x20] sm:$0xf] %v341
                  %v343 = vld [vmem:[%s323 + $0x48] sm:$0xf]
                  %344 = vst [vmem:[%s324 + $0x24] sm:$0xf] %v343
                  %v345 = vld [vmem:[%s323 + $0x50] sm:$0xf]
                  %346 = vst [vmem:[%s324 + $0x28] sm:$0xf] %v345
                  %v347 = vld [vmem:[%s323 + $0x58] sm:$0xf]
                  %348 = vst [vmem:[%s324 + $0x2c] sm:$0xf] %v347
                  %v349 = vld [vmem:[%s323 + $0x60] sm:$0xf]
                  %350 = vst [vmem:[%s324 + $0x30] sm:$0xf] %v349
                  %v351 = vld [vmem:[%s323 + $0x68] sm:$0xf]
                  %352 = vst [vmem:[%s324 + $0x34] sm:$0xf] %v351
                  %v353 = vld [vmem:[%s323 + $0x70] sm:$0xf]
                  %354 = vst [vmem:[%s324 + $0x38] sm:$0xf] %v353
                  %v355 = vld [vmem:[%s323 + $0x78] sm:$0xf]
                  %356 = vst [vmem:[%s324 + $0x3c] sm:$0xf] %v355
                $region71: #{gin_forward.2} parent=58 // loop_footer
                  %s322 = sadd.s32 1, %s318
                $region72: #{gin_forward.2} parent=58 // loop_footer_branch
                  %317 = sbr.rel target = $region68
                $region73: #{gin_forward.2} parent=58 // loop_exit
                  _
              $region59: #{gin_forward.2} parent=43 // pred_fallthru
                _
            $region44: #{gin_forward.2} parent=39 // pred_fallthru
              _
            // Predicated region
            $region45: #{gin_forward.2} parent=39 // pred_check
              _
            $region46: #{gin_forward.2} parent=39 // pred_check_branch
              %264 = sbr.rel (0) target = $region48
            $region47: #{gin_forward.2} parent=39 // pred_region
              loop: start=0, step=1, limit=1
              $region49: #{gin_forward.2} parent=47 // loop_pre_header
                _
              $region50: #{gin_forward.2} parent=47 // loop_header
                %s267 = sphi 0, %s271
                %p268 = scmp.ge.s32.totalorder %s267, 1
                %s272 = sphi %s258, %s258
                %s273 = sphi %s253, %s253
              $region51: #{gin_forward.2} parent=47 // loop_header_branch
                %270 = sbr.rel (%p268) target = $region55
              $region52: #{gin_forward.2} parent=47 // loop_body
                %v274 = vld [vmem:[%s272] sm:$0xf]
                %275 = vst [vmem:[%s273] sm:$0xf] %v274
                %v276 = vld [vmem:[%s272 + $0x8] sm:$0xf]
                %277 = vst [vmem:[%s273 + $0x4] sm:$0xf] %v276
                %v278 = vld [vmem:[%s272 + $0x10] sm:$0xf]
                %279 = vst [vmem:[%s273 + $0x8] sm:$0xf] %v278
                %v280 = vld [vmem:[%s272 + $0x18] sm:$0xf]
                %281 = vst [vmem:[%s273 + $0xc] sm:$0xf] %v280
                %v282 = vld [vmem:[%s272 + $0x20] sm:$0xf]
                %283 = vst [vmem:[%s273 + $0x10] sm:$0xf] %v282
                %v284 = vld [vmem:[%s272 + $0x28] sm:$0xf]
                %285 = vst [vmem:[%s273 + $0x14] sm:$0xf] %v284
                %v286 = vld [vmem:[%s272 + $0x30] sm:$0xf]
                %287 = vst [vmem:[%s273 + $0x18] sm:$0xf] %v286
                %v288 = vld [vmem:[%s272 + $0x38] sm:$0xf]
                %289 = vst [vmem:[%s273 + $0x1c] sm:$0xf] %v288
                %v290 = vld [vmem:[%s272 + $0x40] sm:$0xf]
                %291 = vst [vmem:[%s273 + $0x20] sm:$0xf] %v290
                %v292 = vld [vmem:[%s272 + $0x48] sm:$0xf]
                %293 = vst [vmem:[%s273 + $0x24] sm:$0xf] %v292
                %v294 = vld [vmem:[%s272 + $0x50] sm:$0xf]
                %295 = vst [vmem:[%s273 + $0x28] sm:$0xf] %v294
                %v296 = vld [vmem:[%s272 + $0x58] sm:$0xf]
                %297 = vst [vmem:[%s273 + $0x2c] sm:$0xf] %v296
                %v298 = vld [vmem:[%s272 + $0x60] sm:$0xf]
                %299 = vst [vmem:[%s273 + $0x30] sm:$0xf] %v298
                %v300 = vld [vmem:[%s272 + $0x68] sm:$0xf]
                %301 = vst [vmem:[%s273 + $0x34] sm:$0xf] %v300
                %v302 = vld [vmem:[%s272 + $0x70] sm:$0xf]
                %303 = vst [vmem:[%s273 + $0x38] sm:$0xf] %v302
                %v304 = vld [vmem:[%s272 + $0x78] sm:$0xf]
                %305 = vst [vmem:[%s273 + $0x3c] sm:$0xf] %v304
              $region53: #{gin_forward.2} parent=47 // loop_footer
                %s271 = sadd.s32 1, %s267
              $region54: #{gin_forward.2} parent=47 // loop_footer_branch
                %266 = sbr.rel target = $region50
              $region55: #{gin_forward.2} parent=47 // loop_exit
                _
            $region48: #{gin_forward.2} parent=39 // pred_fallthru
              _
          $region40: #{gin_forward.2} parent=35 // pred_fallthru
            _
          %357 = vnop
        $region36: #{gin_forward.2} parent=31 // pred_fallthru
          _
        // Predicated region
        $region74: #{gin_forward.2} parent=31 // pred_check
          %p358 = pneg %p95
        $region75: #{gin_forward.2} parent=31 // pred_check_branch
          %360 = sbr.rel (%p358) target = $region77
        $region76: #{gin_forward.2} parent=31 // pred_region
          %s361 = smul.u32 16, %s22
          %p362 = scmp.lt.s32.totalorder %s361, 31
          %s363 = scalar_select %p362, %s361, 31
          %s364 = smul.addr %s363, 8
          %s365 = scalar_lea.vmem %s2, %s364
          %s366 = smul.u32 16, %s22
        $region77: #{gin_forward.2} parent=31 // pred_fallthru
          _
        // Predicated region
        $region78: #{gin_forward.2} parent=31 // pred_check
          %p367 = pneg %p121
        $region79: #{gin_forward.2} parent=31 // pred_check_branch
          %369 = sbr.rel (%p367) target = $region81
        $region80: #{gin_forward.2} parent=31 // pred_region
          %s370 = smul.u32 16, %s21
          %p371 = scmp.lt.s32.totalorder %s370, 31
          %s372 = scalar_select %p371, %s370, 31
          %s373 = smul.addr %s372, 8
          %s374 = scalar_lea.vmem %s3, %s373
          %s375 = smul.u32 16, %s21
        $region81: #{gin_forward.2} parent=31 // pred_fallthru
          _
      $region32: #{gin_forward.2} parent=5 // pred_fallthru
        _
      %p376 = scmp.le.s32.totalorder 1, %s14
      %p377 = scmp.lt.s32.totalorder %s14, 5
      %p378 = pnand %p376, %p377
      %p379 = pneg %p378
      // Predicated region
      $region82: #{gin_forward.2} parent=5 // pred_check
        _
      $region83: #{gin_forward.2} parent=5 // pred_check_branch
        %381 = sbr.rel (%p378) target = $region85
      $region84: #{gin_forward.2} parent=5 // pred_region
        %s382 = ssub.s32 %s14, 1
        %s383 = sand.u32 %s62, 1
        %s384 = sand.u32 %s62, 1
        %s385 = smul.addr %s384, 64
        %s386 = scalar_lea.vmem [#allocation4], %s385
        // Predicated region
        $region86: #{gin_forward.2} parent=84 // pred_check
          %p387 = pneg %p75
        $region87: #{gin_forward.2} parent=84 // pred_check_branch
          %389 = sbr.rel (%p387) target = $region89
        $region88: #{gin_forward.2} parent=84 // pred_region
          _
        $region89: #{gin_forward.2} parent=84 // pred_fallthru
          _
        %p390 = pneg %p47
        %p391 = pneg %p44
        %s392 = sand.u32 %s62, 1
        %s393 = sand.u32 %s62, 1
        %s394 = smul.addr %s393, 64
        %s395 = scalar_lea.vmem [#allocation4], %s394
        %p396 = pneg %p75
        %p397 = pneg %p72
        %s398 = smul.u32 16, %s24
        %p399 = scmp.lt.s32.totalorder %s398, 31
        %s400 = scalar_select %p399, %s398, 31
        %s401 = smul.addr %s400, 8
        %s402 = scalar_lea.vmem %s2, %s401
        %p403 = pneg %p101
        %p404 = pneg %p98
        %s405 = smul.u32 16, %s23
        %p406 = scmp.lt.s32.totalorder %s405, 31
        %s407 = scalar_select %p406, %s405, 31
        %s408 = smul.addr %s407, 8
        %s409 = scalar_lea.vmem %s3, %s408
        %p410 = pneg %p127
        %p411 = pneg %p124
        %p412 = pneg %p148
        %p413 = pneg %p145
        %p414 = pneg %p169
        %p415 = pneg %p166
        %p416 = pneg %p190
        %p417 = pneg %p187
        %p418 = pneg %p216
        %p419 = pneg %p213
        %s420 = smul.u32 16, %s23
        %p421 = scmp.lt.s32.totalorder %s420, 31
        %s422 = scalar_select %p421, %s420, 31
        %s423 = smul.addr %s422, 8
        %s424 = scalar_lea.vmem %s7, %s423
        %s425 = smul.u32 16, %s23
        %s426 = smul.u32 16, %s24
        %p427 = scmp.lt.s32.totalorder %s426, 31
        %s428 = scalar_select %p427, %s426, 31
        %s429 = smul.addr %s428, 8
        %s430 = scalar_lea.vmem %s2, %s429
        %s431 = smul.u32 16, %s24
        %s432 = smul.u32 16, %s23
        %p433 = scmp.lt.s32.totalorder %s432, 31
        %s434 = scalar_select %p433, %s432, 31
        %s435 = smul.addr %s434, 8
        %s436 = scalar_lea.vmem %s3, %s435
        %s437 = smul.u32 16, %s23
        %s438 = smul.u32 16, %s23
        %p439 = scmp.lt.s32.totalorder %s438, 31
        %s440 = scalar_select %p439, %s438, 31
        %s441 = smul.addr %s440, 8
        %s442 = scalar_lea.vmem %s7, %s441
        %s443 = smul.u32 16, %s23
        %p445 = scmp.eq.s32.totalorder %s24, 0
        // Predicated region
        $region90: #{gin_forward.2} parent=84 // pred_check
          %p446 = pneg %p445
        $region91: #{gin_forward.2} parent=84 // pred_check_branch
          %448 = sbr.rel (%p446) target = $region93
        $region92: #{gin_forward.2} parent=84 // pred_region
          %s449 = sld [smem:[#allocation3]]
          %v450 = vld [vmem:[%s436] sm:$0xff]
          %v451 = vld [vmem:[%s436 + $0x8] sm:$0xff]
          %v452 = vld [vmem:[%s436 + $0x10] sm:$0xff]
          %v453 = vld [vmem:[%s436 + $0x18] sm:$0xff]
          %v454 = vld [vmem:[%s436 + $0x20] sm:$0xff]
          %v455 = vld [vmem:[%s436 + $0x28] sm:$0xff]
          %v456 = vld [vmem:[%s436 + $0x30] sm:$0xff]
          %v457 = vld [vmem:[%s436 + $0x38] sm:$0xff]
          %v458 = vld [vmem:[%s436 + $0x40] sm:$0xff]
          %v459 = vld [vmem:[%s436 + $0x48] sm:$0xff]
          %v460 = vld [vmem:[%s436 + $0x50] sm:$0xff]
          %v461 = vld [vmem:[%s436 + $0x58] sm:$0xff]
          %v462 = vld [vmem:[%s436 + $0x60] sm:$0xff]
          %v463 = vld [vmem:[%s436 + $0x68] sm:$0xff]
          %v464 = vld [vmem:[%s436 + $0x70] sm:$0xff]
          %v465 = vld [vmem:[%s436 + $0x78] sm:$0xff]
          %v466 = vstv %s449
          %v467 = vmul.f32 %v466, %v450
          %v468 = vmul.f32 %v466, %v451
          %v469 = vmul.f32 %v466, %v452
          %v470 = vmul.f32 %v466, %v453
          %v471 = vmul.f32 %v466, %v454
          %v472 = vmul.f32 %v466, %v455
          %v473 = vmul.f32 %v466, %v456
          %v474 = vmul.f32 %v466, %v457
          %v475 = vmul.f32 %v466, %v458
          %v476 = vmul.f32 %v466, %v459
          %v477 = vmul.f32 %v466, %v460
          %v478 = vmul.f32 %v466, %v461
          %v479 = vmul.f32 %v466, %v462
          %v480 = vmul.f32 %v466, %v463
          %v481 = vmul.f32 %v466, %v464
          %v482 = vmul.f32 %v466, %v465
          %483 = vst [vmem:[#allocation2] sm:$0xff] %v467
          %484 = vst [vmem:[#allocation2 + $0x8] sm:$0xff] %v468
          %485 = vst [vmem:[#allocation2 + $0x10] sm:$0xff] %v469
          %486 = vst [vmem:[#allocation2 + $0x18] sm:$0xff] %v470
          %487 = vst [vmem:[#allocation2 + $0x20] sm:$0xff] %v471
          %488 = vst [vmem:[#allocation2 + $0x28] sm:$0xff] %v472
          %489 = vst [vmem:[#allocation2 + $0x30] sm:$0xff] %v473
          %490 = vst [vmem:[#allocation2 + $0x38] sm:$0xff] %v474
          %491 = vst [vmem:[#allocation2 + $0x40] sm:$0xff] %v475
          %492 = vst [vmem:[#allocation2 + $0x48] sm:$0xff] %v476
          %493 = vst [vmem:[#allocation2 + $0x50] sm:$0xff] %v477
          %494 = vst [vmem:[#allocation2 + $0x58] sm:$0xff] %v478
          %495 = vst [vmem:[#allocation2 + $0x60] sm:$0xff] %v479
          %496 = vst [vmem:[#allocation2 + $0x68] sm:$0xff] %v480
          %497 = vst [vmem:[#allocation2 + $0x70] sm:$0xff] %v481
          %498 = vst [vmem:[#allocation2 + $0x78] sm:$0xff] %v482
        $region93: #{gin_forward.2} parent=84 // pred_fallthru
          _
        %v499 = vld [vmem:[#allocation2] sm:$0xff]
        %v500 = vld [vmem:[#allocation2 + $0x8] sm:$0xff]
        %v501 = vld [vmem:[#allocation2 + $0x10] sm:$0xff]
        %v502 = vld [vmem:[#allocation2 + $0x18] sm:$0xff]
        %v503 = vld [vmem:[#allocation2 + $0x20] sm:$0xff]
        %v504 = vld [vmem:[#allocation2 + $0x28] sm:$0xff]
        %v505 = vld [vmem:[#allocation2 + $0x30] sm:$0xff]
        %v506 = vld [vmem:[#allocation2 + $0x38] sm:$0xff]
        %v507 = vld [vmem:[#allocation2 + $0x40] sm:$0xff]
        %v508 = vld [vmem:[#allocation2 + $0x48] sm:$0xff]
        %v509 = vld [vmem:[#allocation2 + $0x50] sm:$0xff]
        %v510 = vld [vmem:[#allocation2 + $0x58] sm:$0xff]
        %v511 = vld [vmem:[#allocation2 + $0x60] sm:$0xff]
        %v512 = vld [vmem:[#allocation2 + $0x68] sm:$0xff]
        %v513 = vld [vmem:[#allocation2 + $0x70] sm:$0xff]
        %v514 = vld [vmem:[#allocation2 + $0x78] sm:$0xff]
        %v515 = vld [vmem:[%s386] sm:$0xf]
        %v516 = vld [vmem:[%s386 + $0x4] sm:$0xf]
        %v517 = vld [vmem:[%s386 + $0x8] sm:$0xf]
        %v518 = vld [vmem:[%s386 + $0xc] sm:$0xf]
        %v519 = vld [vmem:[%s386 + $0x10] sm:$0xf]
        %v520 = vld [vmem:[%s386 + $0x14] sm:$0xf]
        %v521 = vld [vmem:[%s386 + $0x18] sm:$0xf]
        %v522 = vld [vmem:[%s386 + $0x1c] sm:$0xf]
        %v523 = vld [vmem:[%s386 + $0x20] sm:$0xf]
        %v524 = vld [vmem:[%s386 + $0x24] sm:$0xf]
        %v525 = vld [vmem:[%s386 + $0x28] sm:$0xf]
        %v526 = vld [vmem:[%s386 + $0x2c] sm:$0xf]
        %v527 = vld [vmem:[%s386 + $0x30] sm:$0xf]
        %v528 = vld [vmem:[%s386 + $0x34] sm:$0xf]
        %v529 = vld [vmem:[%s386 + $0x38] sm:$0xf]
        %v530 = vld [vmem:[%s386 + $0x3c] sm:$0xf]
        %v531 = vld [vmem:[%s430] sm:$0xff]
        %v532 = vld [vmem:[%s430 + $0x8] sm:$0xff]
        %v533 = vld [vmem:[%s430 + $0x10] sm:$0xff]
        %v534 = vld [vmem:[%s430 + $0x18] sm:$0xff]
        %v535 = vld [vmem:[%s430 + $0x20] sm:$0xff]
        %v536 = vld [vmem:[%s430 + $0x28] sm:$0xff]
        %v537 = vld [vmem:[%s430 + $0x30] sm:$0xff]
        %v538 = vld [vmem:[%s430 + $0x38] sm:$0xff]
        %v539 = vld [vmem:[%s430 + $0x40] sm:$0xff]
        %v540 = vld [vmem:[%s430 + $0x48] sm:$0xff]
        %v541 = vld [vmem:[%s430 + $0x50] sm:$0xff]
        %v542 = vld [vmem:[%s430 + $0x58] sm:$0xff]
        %v543 = vld [vmem:[%s430 + $0x60] sm:$0xff]
        %v544 = vld [vmem:[%s430 + $0x68] sm:$0xff]
        %v545 = vld [vmem:[%s430 + $0x70] sm:$0xff]
        %v546 = vld [vmem:[%s430 + $0x78] sm:$0xff]
        %v547 = vpack.c.bf16 %v532, %v531
        %v548 = vpack.c.bf16 %v534, %v533
        %v549 = vpack.c.bf16 %v536, %v535
        %v550 = vpack.c.bf16 %v538, %v537
        %v551 = vpack.c.bf16 %v540, %v539
        %v552 = vpack.c.bf16 %v542, %v541
        %v553 = vpack.c.bf16 %v544, %v543
        %v554 = vpack.c.bf16 %v546, %v545
        %v571 = vunpack.c.l.b16 %v515
        %v572 = vunpack.c.l.b16 %v516
        %v573 = vunpack.c.l.b16 %v517
        %v574 = vunpack.c.l.b16 %v518
        %v575 = vunpack.c.l.b16 %v519
        %v576 = vunpack.c.l.b16 %v520
        %v577 = vunpack.c.l.b16 %v521
        %v578 = vunpack.c.l.b16 %v522
        %v579 = vunpack.c.l.b16 %v523
        %v580 = vunpack.c.l.b16 %v524
        %v581 = vunpack.c.l.b16 %v525
        %v582 = vunpack.c.l.b16 %v526
        %v583 = vunpack.c.l.b16 %v527
        %v584 = vunpack.c.l.b16 %v528
        %v585 = vunpack.c.l.b16 %v529
        %v586 = vunpack.c.l.b16 %v530
        %v587 = vpack.c.b16 %v572, %v571
        %v588 = vpack.c.b16 %v574, %v573
        %v589 = vpack.c.b16 %v576, %v575
        %v590 = vpack.c.b16 %v578, %v577
        %v591 = vpack.c.b16 %v580, %v579
        %v592 = vpack.c.b16 %v582, %v581
        %v593 = vpack.c.b16 %v584, %v583
        %v594 = vpack.c.b16 %v586, %v585
        %603 = vmatprep.subr.bf16.mxu0 0
        %604 = vmatpush1.bf16.msra.mxu0 %v547
        %605 = vmatprep.subr.bf16.mxu0 0
        %606 = vmatpush1.bf16.msra.mxu0 %v548
        %607 = vmatprep.subr.bf16.mxu0 0
        %608 = vmatpush1.bf16.msra.mxu0 %v549
        %609 = vmatprep.subr.bf16.mxu0 0
        %610 = vmatpush1.bf16.msra.mxu0 %v550
        %611 = vmatprep.subr.bf16.mxu0 0
        %612 = vmatpush1.bf16.msra.mxu0 %v551
        %613 = vmatprep.subr.bf16.mxu0 0
        %614 = vmatpush1.bf16.msra.mxu0 %v552
        %615 = vmatprep.subr.bf16.mxu0 0
        %616 = vmatpush1.bf16.msra.mxu0 %v553
        %617 = vmatprep.subr.bf16.mxu0 0
        %618 = vmatpush1.bf16.msra.mxu0 %v554
        %619 = vmatprep.subr.bf16.mxu0 0
        %620 = vmatpush1.bf16.msra.mxu0 0
        %621 = vmatprep.subr.bf16.mxu0 0
        %622 = vmatpush1.bf16.msra.mxu0 0
        %623 = vmatprep.subr.bf16.mxu0 0
        %624 = vmatpush1.bf16.msra.mxu0 0
        %625 = vmatprep.subr.bf16.mxu0 0
        %626 = vmatpush1.bf16.msra.mxu0 0
        %627 = vmatprep.subr.bf16.mxu0 0
        %628 = vmatpush1.bf16.msra.mxu0 0
        %629 = vmatprep.subr.bf16.mxu0 0
        %630 = vmatpush1.bf16.msra.mxu0 0
        %631 = vmatprep.subr.bf16.mxu0 0
        %632 = vmatpush1.bf16.msra.mxu0 0
        %633 = vmatprep.subr.bf16.mxu0 0
        %634 = vmatpush1.bf16.msra.mxu0 0
        %635 = vmatprep.mubr.bf16.mxu0 0
        %636 = vmatmul.mubr.bf16.gmra.mrb[0].mxu0 %v587
        %v637 = vpop.f32.mrb[0].mxu0
        %v638 = vadd.f32 0.0, %v637
        %v639 = vpop.f32.mrb[0].mxu0
        %v640 = vpop.f32.mrb[0].mxu0
        %v641 = vadd.f32 0.0, %v640
        %v642 = vpop.f32.mrb[0].mxu0
        %643 = vmatprep.mubr.bf16.mxu0 0
        %644 = vmatmul.mubr.bf16.gmra.mrb[0].mxu0 %v588
        %v645 = vpop.f32.mrb[0].mxu0
        %v646 = vadd.f32 0.0, %v645
        %v647 = vpop.f32.mrb[0].mxu0
        %v648 = vpop.f32.mrb[0].mxu0
        %v649 = vadd.f32 0.0, %v648
        %v650 = vpop.f32.mrb[0].mxu0
        %651 = vmatprep.mubr.bf16.mxu0 0
        %652 = vmatmul.mubr.bf16.gmra.mrb[0].mxu0 %v589
        %v653 = vpop.f32.mrb[0].mxu0
        %v654 = vadd.f32 0.0, %v653
        %v655 = vpop.f32.mrb[0].mxu0
        %v656 = vpop.f32.mrb[0].mxu0
        %v657 = vadd.f32 0.0, %v656
        %v658 = vpop.f32.mrb[0].mxu0
        %659 = vmatprep.mubr.bf16.mxu0 0
        %660 = vmatmul.mubr.bf16.gmra.mrb[0].mxu0 %v590
        %v661 = vpop.f32.mrb[0].mxu0
        %v662 = vadd.f32 0.0, %v661
        %v663 = vpop.f32.mrb[0].mxu0
        %v664 = vpop.f32.mrb[0].mxu0
        %v665 = vadd.f32 0.0, %v664
        %v666 = vpop.f32.mrb[0].mxu0
        %667 = vmatprep.mubr.bf16.mxu0 0
        %668 = vmatmul.mubr.bf16.gmra.mrb[0].mxu0 %v591
        %v669 = vpop.f32.mrb[0].mxu0
        %v670 = vadd.f32 0.0, %v669
        %v671 = vpop.f32.mrb[0].mxu0
        %v672 = vpop.f32.mrb[0].mxu0
        %v673 = vadd.f32 0.0, %v672
        %v674 = vpop.f32.mrb[0].mxu0
        %675 = vmatprep.mubr.bf16.mxu0 0
        %676 = vmatmul.mubr.bf16.gmra.mrb[0].mxu0 %v592
        %v677 = vpop.f32.mrb[0].mxu0
        %v678 = vadd.f32 0.0, %v677
        %v679 = vpop.f32.mrb[0].mxu0
        %v680 = vpop.f32.mrb[0].mxu0
        %v681 = vadd.f32 0.0, %v680
        %v682 = vpop.f32.mrb[0].mxu0
        %683 = vmatprep.mubr.bf16.mxu0 0
        %684 = vmatmul.mubr.bf16.gmra.mrb[0].mxu0 %v593
        %v685 = vpop.f32.mrb[0].mxu0
        %v686 = vadd.f32 0.0, %v685
        %v687 = vpop.f32.mrb[0].mxu0
        %v688 = vpop.f32.mrb[0].mxu0
        %v689 = vadd.f32 0.0, %v688
        %v690 = vpop.f32.mrb[0].mxu0
        %691 = vmatprep.mubr.bf16.mxu0 0
        %692 = vmatmul.mubr.bf16.gmra.mrb[0].mxu0 %v594
        %v693 = vpop.f32.mrb[0].mxu0
        %v694 = vadd.f32 0.0, %v693
        %v695 = vpop.f32.mrb[0].mxu0
        %v696 = vpop.f32.mrb[0].mxu0
        %v697 = vadd.f32 0.0, %v696
        %v698 = vpop.f32.mrb[0].mxu0
        %699 = vdwg.mxu0
        %v700 = vadd.f32 %v499, %v638
        %v701 = vadd.f32 %v500, %v641
        %v702 = vadd.f32 %v501, %v646
        %v703 = vadd.f32 %v502, %v649
        %v704 = vadd.f32 %v503, %v654
        %v705 = vadd.f32 %v504, %v657
        %v706 = vadd.f32 %v505, %v662
        %v707 = vadd.f32 %v506, %v665
        %v708 = vadd.f32 %v507, %v670
        %v709 = vadd.f32 %v508, %v673
        %v710 = vadd.f32 %v509, %v678
        %v711 = vadd.f32 %v510, %v681
        %v712 = vadd.f32 %v511, %v686
        %v713 = vadd.f32 %v512, %v689
        %v714 = vadd.f32 %v513, %v694
        %v715 = vadd.f32 %v514, %v697
        %716 = vst [vmem:[#allocation2] sm:$0xff] %v700
        %717 = vst [vmem:[#allocation2 + $0x8] sm:$0xff] %v701
        %718 = vst [vmem:[#allocation2 + $0x10] sm:$0xff] %v702
        %719 = vst [vmem:[#allocation2 + $0x18] sm:$0xff] %v703
        %720 = vst [vmem:[#allocation2 + $0x20] sm:$0xff] %v704
        %721 = vst [vmem:[#allocation2 + $0x28] sm:$0xff] %v705
        %722 = vst [vmem:[#allocation2 + $0x30] sm:$0xff] %v706
        %723 = vst [vmem:[#allocation2 + $0x38] sm:$0xff] %v707
        %724 = vst [vmem:[#allocation2 + $0x40] sm:$0xff] %v708
        %725 = vst [vmem:[#allocation2 + $0x48] sm:$0xff] %v709
        %726 = vst [vmem:[#allocation2 + $0x50] sm:$0xff] %v710
        %727 = vst [vmem:[#allocation2 + $0x58] sm:$0xff] %v711
        %728 = vst [vmem:[#allocation2 + $0x60] sm:$0xff] %v712
        %729 = vst [vmem:[#allocation2 + $0x68] sm:$0xff] %v713
        %730 = vst [vmem:[#allocation2 + $0x70] sm:$0xff] %v714
        %731 = vst [vmem:[#allocation2 + $0x78] sm:$0xff] %v715
        %p732 = scmp.eq.s32.totalorder %s24, 1
        // Predicated region
        $region94: #{gin_forward.2} parent=84 // pred_check
          %p733 = pneg %p732
        $region95: #{gin_forward.2} parent=84 // pred_check_branch
          %735 = sbr.rel (%p733) target = $region97
        $region96: #{gin_forward.2} parent=84 // pred_region
          %v736 = vld [vmem:[#allocation2] sm:$0xff]
          %v737 = vld [vmem:[#allocation2 + $0x8] sm:$0xff]
          %v738 = vld [vmem:[#allocation2 + $0x10] sm:$0xff]
          %v739 = vld [vmem:[#allocation2 + $0x18] sm:$0xff]
          %v740 = vld [vmem:[#allocation2 + $0x20] sm:$0xff]
          %v741 = vld [vmem:[#allocation2 + $0x28] sm:$0xff]
          %v742 = vld [vmem:[#allocation2 + $0x30] sm:$0xff]
          %v743 = vld [vmem:[#allocation2 + $0x38] sm:$0xff]
          %v744 = vld [vmem:[#allocation2 + $0x40] sm:$0xff]
          %v745 = vld [vmem:[#allocation2 + $0x48] sm:$0xff]
          %v746 = vld [vmem:[#allocation2 + $0x50] sm:$0xff]
          %v747 = vld [vmem:[#allocation2 + $0x58] sm:$0xff]
          %v748 = vld [vmem:[#allocation2 + $0x60] sm:$0xff]
          %v749 = vld [vmem:[#allocation2 + $0x68] sm:$0xff]
          %v750 = vld [vmem:[#allocation2 + $0x70] sm:$0xff]
          %v751 = vld [vmem:[#allocation2 + $0x78] sm:$0xff]
          %v752 = vld [vmem:[%s4] sm:$0xff]
          %v753 = vld [vmem:[%s4 + $0x8] sm:$0xff]
          %v754 = vld [vmem:[%s4 + $0x10] sm:$0xff]
          %v755 = vld [vmem:[%s4 + $0x18] sm:$0xff]
          %v756 = vld [vmem:[%s4 + $0x20] sm:$0xff]
          %v757 = vld [vmem:[%s4 + $0x28] sm:$0xff]
          %v758 = vld [vmem:[%s4 + $0x30] sm:$0xff]
          %v759 = vld [vmem:[%s4 + $0x38] sm:$0xff]
          %v760 = vld [vmem:[%s4 + $0x40] sm:$0xff]
          %v761 = vld [vmem:[%s4 + $0x48] sm:$0xff]
          %v762 = vld [vmem:[%s4 + $0x50] sm:$0xff]
          %v763 = vld [vmem:[%s4 + $0x58] sm:$0xff]
          %v764 = vld [vmem:[%s4 + $0x60] sm:$0xff]
          %v765 = vld [vmem:[%s4 + $0x68] sm:$0xff]
          %v766 = vld [vmem:[%s4 + $0x70] sm:$0xff]
          %v767 = vld [vmem:[%s4 + $0x78] sm:$0xff]
          %768 = vmatprep.subr.mxu0 0.0
          %769 = vmatpush1.msra.mxu0 %v752
          %770 = vmatprep.subr.mxu0 0.0
          %771 = vmatpush1.msra.mxu0 %v753
          %772 = vmatprep.subr.mxu0 0.0
          %773 = vmatpush1.msra.mxu0 %v754
          %774 = vmatprep.subr.mxu0 0.0
          %775 = vmatpush1.msra.mxu0 %v755
          %776 = vmatprep.subr.mxu0 0.0
          %777 = vmatpush1.msra.mxu0 %v756
          %778 = vmatprep.subr.mxu0 0.0
          %779 = vmatpush1.msra.mxu0 %v757
          %780 = vmatprep.subr.mxu0 0.0
          %781 = vmatpush1.msra.mxu0 %v758
          %782 = vmatprep.subr.mxu0 0.0
          %783 = vmatpush1.msra.mxu0 %v759
          %784 = vmatprep.subr.mxu0 0.0
          %785 = vmatpush1.msra.mxu0 %v760
          %786 = vmatprep.subr.mxu0 0.0
          %787 = vmatpush1.msra.mxu0 %v761
          %788 = vmatprep.subr.mxu0 0.0
          %789 = vmatpush1.msra.mxu0 %v762
          %790 = vmatprep.subr.mxu0 0.0
          %791 = vmatpush1.msra.mxu0 %v763
          %792 = vmatprep.subr.mxu0 0.0
          %793 = vmatpush1.msra.mxu0 %v764
          %794 = vmatprep.subr.mxu0 0.0
          %795 = vmatpush1.msra.mxu0 %v765
          %796 = vmatprep.subr.mxu0 0.0
          %797 = vmatpush1.msra.mxu0 %v766
          %798 = vmatprep.subr.mxu0 0.0
          %799 = vmatpush1.msra.mxu0 %v767
          %800 = vmatprep.subr.mxu0 0.0
          %801 = vmatpush1.msra.mxu0 0.0
          %802 = vmatprep.subr.mxu0 0.0
          %803 = vmatpush1.msra.mxu0 0.0
          %804 = vmatprep.subr.mxu0 0.0
          %805 = vmatpush1.msra.mxu0 0.0
          %806 = vmatprep.subr.mxu0 0.0
          %807 = vmatpush1.msra.mxu0 0.0
          %808 = vmatprep.subr.mxu0 0.0
          %809 = vmatpush1.msra.mxu0 0.0
          %810 = vmatprep.subr.mxu0 0.0
          %811 = vmatpush1.msra.mxu0 0.0
          %812 = vmatprep.subr.mxu0 0.0
          %813 = vmatpush1.msra.mxu0 0.0
          %814 = vmatprep.subr.mxu0 0.0
          %815 = vmatpush1.msra.mxu0 0.0
          %816 = vmatprep.subr.mxu0 0.0
          %817 = vmatpush1.msra.mxu0 0.0
          %818 = vmatprep.subr.mxu0 0.0
          %819 = vmatpush1.msra.mxu0 0.0
          %820 = vmatprep.subr.mxu0 0.0
          %821 = vmatpush1.msra.mxu0 0.0
          %822 = vmatprep.subr.mxu0 0.0
          %823 = vmatpush1.msra.mxu0 0.0
          %824 = vmatprep.subr.mxu0 0.0
          %825 = vmatpush1.msra.mxu0 0.0
          %826 = vmatprep.subr.mxu0 0.0
          %827 = vmatpush1.msra.mxu0 0.0
          %828 = vmatprep.subr.mxu0 0.0
          %829 = vmatpush1.msra.mxu0 0.0
          %830 = vmatprep.subr.mxu0 0.0
          %831 = vmatpush1.msra.mxu0 0.0
          %832 = vmatprep.mubr.f32.mxu0 0.0
          %833 = vmatmul.mubr.f32.gmra.mrb[0].mxu0 %v736
          %v834 = vpop.f32.mrb[0].mxu0
          %v835 = vadd.f32 0.0, %v834
          %v836 = vpop.f32.mrb[0].mxu0
          %837 = vmatprep.mubr.f32.mxu0 0.0
          %838 = vmatmul.mubr.f32.gmra.mrb[0].mxu0 %v737
          %v839 = vpop.f32.mrb[0].mxu0
          %v840 = vadd.f32 0.0, %v839
          %v841 = vpop.f32.mrb[0].mxu0
          %842 = vmatprep.mubr.f32.mxu0 0.0
          %843 = vmatmul.mubr.f32.gmra.mrb[0].mxu0 %v738
          %v844 = vpop.f32.mrb[0].mxu0
          %v845 = vadd.f32 0.0, %v844
          %v846 = vpop.f32.mrb[0].mxu0
          %847 = vmatprep.mubr.f32.mxu0 0.0
          %848 = vmatmul.mubr.f32.gmra.mrb[0].mxu0 %v739
          %v849 = vpop.f32.mrb[0].mxu0
          %v850 = vadd.f32 0.0, %v849
          %v851 = vpop.f32.mrb[0].mxu0
          %852 = vmatprep.mubr.f32.mxu0 0.0
          %853 = vmatmul.mubr.f32.gmra.mrb[0].mxu0 %v740
          %v854 = vpop.f32.mrb[0].mxu0
          %v855 = vadd.f32 0.0, %v854
          %v856 = vpop.f32.mrb[0].mxu0
          %857 = vmatprep.mubr.f32.mxu0 0.0
          %858 = vmatmul.mubr.f32.gmra.mrb[0].mxu0 %v741
          %v859 = vpop.f32.mrb[0].mxu0
          %v860 = vadd.f32 0.0, %v859
          %v861 = vpop.f32.mrb[0].mxu0
          %862 = vmatprep.mubr.f32.mxu0 0.0
          %863 = vmatmul.mubr.f32.gmra.mrb[0].mxu0 %v742
          %v864 = vpop.f32.mrb[0].mxu0
          %v865 = vadd.f32 0.0, %v864
          %v866 = vpop.f32.mrb[0].mxu0
          %867 = vmatprep.mubr.f32.mxu0 0.0
          %868 = vmatmul.mubr.f32.gmra.mrb[0].mxu0 %v743
          %v869 = vpop.f32.mrb[0].mxu0
          %v870 = vadd.f32 0.0, %v869
          %v871 = vpop.f32.mrb[0].mxu0
          %872 = vmatprep.mubr.f32.mxu0 0.0
          %873 = vmatmul.mubr.f32.gmra.mrb[0].mxu0 %v744
          %v874 = vpop.f32.mrb[0].mxu0
          %v875 = vadd.f32 0.0, %v874
          %v876 = vpop.f32.mrb[0].mxu0
          %877 = vmatprep.mubr.f32.mxu0 0.0
          %878 = vmatmul.mubr.f32.gmra.mrb[0].mxu0 %v745
          %v879 = vpop.f32.mrb[0].mxu0
          %v880 = vadd.f32 0.0, %v879
          %v881 = vpop.f32.mrb[0].mxu0
          %882 = vmatprep.mubr.f32.mxu0 0.0
          %883 = vmatmul.mubr.f32.gmra.mrb[0].mxu0 %v746
          %v884 = vpop.f32.mrb[0].mxu0
          %v885 = vadd.f32 0.0, %v884
          %v886 = vpop.f32.mrb[0].mxu0
          %887 = vmatprep.mubr.f32.mxu0 0.0
          %888 = vmatmul.mubr.f32.gmra.mrb[0].mxu0 %v747
          %v889 = vpop.f32.mrb[0].mxu0
          %v890 = vadd.f32 0.0, %v889
          %v891 = vpop.f32.mrb[0].mxu0
          %892 = vmatprep.mubr.f32.mxu0 0.0
          %893 = vmatmul.mubr.f32.gmra.mrb[0].mxu0 %v748
          %v894 = vpop.f32.mrb[0].mxu0
          %v895 = vadd.f32 0.0, %v894
          %v896 = vpop.f32.mrb[0].mxu0
          %897 = vmatprep.mubr.f32.mxu0 0.0
          %898 = vmatmul.mubr.f32.gmra.mrb[0].mxu0 %v749
          %v899 = vpop.f32.mrb[0].mxu0
          %v900 = vadd.f32 0.0, %v899
          %v901 = vpop.f32.mrb[0].mxu0
          %902 = vmatprep.mubr.f32.mxu0 0.0
          %903 = vmatmul.mubr.f32.gmra.mrb[0].mxu0 %v750
          %v904 = vpop.f32.mrb[0].mxu0
          %v905 = vadd.f32 0.0, %v904
          %v906 = vpop.f32.mrb[0].mxu0
          %907 = vmatprep.mubr.f32.mxu0 0.0
          %908 = vmatmul.mubr.f32.gmra.mrb[0].mxu0 %v751
          %v909 = vpop.f32.mrb[0].mxu0
          %v910 = vadd.f32 0.0, %v909
          %v911 = vpop.f32.mrb[0].mxu0
          %912 = vdwg.mxu0
          %v913 = vld [vmem:[%s6] sm:$0x1]
          %v914 = vlaneseq
          %v915 = vshrl.u32 %v914, 7
          %v916 = vsub.s32 0, %v915
          %v917 = vrot.slane %v913, %v916
          %v918 = vmul.f32 %v835, %v917
          %v919 = vmul.f32 %v840, %v917
          %v920 = vmul.f32 %v845, %v917
          %v921 = vmul.f32 %v850, %v917
          %v922 = vmul.f32 %v855, %v917
          %v923 = vmul.f32 %v860, %v917
          %v924 = vmul.f32 %v865, %v917
          %v925 = vmul.f32 %v870, %v917
          %v926 = vmul.f32 %v875, %v917
          %v927 = vmul.f32 %v880, %v917
          %v928 = vmul.f32 %v885, %v917
          %v929 = vmul.f32 %v890, %v917
          %v930 = vmul.f32 %v895, %v917
          %v931 = vmul.f32 %v900, %v917
          %v932 = vmul.f32 %v905, %v917
          %v933 = vmul.f32 %v910, %v917
          %v934 = vld [vmem:[%s6 + $0x1] sm:$0x1]
          %v935 = vlaneseq
          %v936 = vshrl.u32 %v935, 7
          %v937 = vsub.s32 0, %v936
          %v938 = vrot.slane %v934, %v937
          %v939 = vadd.f32 %v918, %v938
          %v940 = vadd.f32 %v919, %v938
          %v941 = vadd.f32 %v920, %v938
          %v942 = vadd.f32 %v921, %v938
          %v943 = vadd.f32 %v922, %v938
          %v944 = vadd.f32 %v923, %v938
          %v945 = vadd.f32 %v924, %v938
          %v946 = vadd.f32 %v925, %v938
          %v947 = vadd.f32 %v926, %v938
          %v948 = vadd.f32 %v927, %v938
          %v949 = vadd.f32 %v928, %v938
          %v950 = vadd.f32 %v929, %v938
          %v951 = vadd.f32 %v930, %v938
          %v952 = vadd.f32 %v931, %v938
          %v953 = vadd.f32 %v932, %v938
          %v954 = vadd.f32 %v933, %v938
          %v955 = vmax.f32 %v939, 0.0
          %v956 = vmax.f32 %v940, 0.0
          %v957 = vmax.f32 %v941, 0.0
          %v958 = vmax.f32 %v942, 0.0
          %v959 = vmax.f32 %v943, 0.0
          %v960 = vmax.f32 %v944, 0.0
          %v961 = vmax.f32 %v945, 0.0
          %v962 = vmax.f32 %v946, 0.0
          %v963 = vmax.f32 %v947, 0.0
          %v964 = vmax.f32 %v948, 0.0
          %v965 = vmax.f32 %v949, 0.0
          %v966 = vmax.f32 %v950, 0.0
          %v967 = vmax.f32 %v951, 0.0
          %v968 = vmax.f32 %v952, 0.0
          %v969 = vmax.f32 %v953, 0.0
          %v970 = vmax.f32 %v954, 0.0
          %v971 = vld [vmem:[%s5] sm:$0xff]
          %v972 = vld [vmem:[%s5 + $0x8] sm:$0xff]
          %v973 = vld [vmem:[%s5 + $0x10] sm:$0xff]
          %v974 = vld [vmem:[%s5 + $0x18] sm:$0xff]
          %v975 = vld [vmem:[%s5 + $0x20] sm:$0xff]
          %v976 = vld [vmem:[%s5 + $0x28] sm:$0xff]
          %v977 = vld [vmem:[%s5 + $0x30] sm:$0xff]
          %v978 = vld [vmem:[%s5 + $0x38] sm:$0xff]
          %v979 = vld [vmem:[%s5 + $0x40] sm:$0xff]
          %v980 = vld [vmem:[%s5 + $0x48] sm:$0xff]
          %v981 = vld [vmem:[%s5 + $0x50] sm:$0xff]
          %v982 = vld [vmem:[%s5 + $0x58] sm:$0xff]
          %v983 = vld [vmem:[%s5 + $0x60] sm:$0xff]
          %v984 = vld [vmem:[%s5 + $0x68] sm:$0xff]
          %v985 = vld [vmem:[%s5 + $0x70] sm:$0xff]
          %v986 = vld [vmem:[%s5 + $0x78] sm:$0xff]
          %987 = vmatprep.subr.mxu0 0.0
          %988 = vmatpush1.msra.mxu0 %v971
          %989 = vmatprep.subr.mxu0 0.0
          %990 = vmatpush1.msra.mxu0 %v972
          %991 = vmatprep.subr.mxu0 0.0
          %992 = vmatpush1.msra.mxu0 %v973
          %993 = vmatprep.subr.mxu0 0.0
          %994 = vmatpush1.msra.mxu0 %v974
          %995 = vmatprep.subr.mxu0 0.0
          %996 = vmatpush1.msra.mxu0 %v975
          %997 = vmatprep.subr.mxu0 0.0
          %998 = vmatpush1.msra.mxu0 %v976
          %999 = vmatprep.subr.mxu0 0.0
          %1000 = vmatpush1.msra.mxu0 %v977
          %1001 = vmatprep.subr.mxu0 0.0
          %1002 = vmatpush1.msra.mxu0 %v978
          %1003 = vmatprep.subr.mxu0 0.0
          %1004 = vmatpush1.msra.mxu0 %v979
          %1005 = vmatprep.subr.mxu0 0.0
          %1006 = vmatpush1.msra.mxu0 %v980
          %1007 = vmatprep.subr.mxu0 0.0
          %1008 = vmatpush1.msra.mxu0 %v981
          %1009 = vmatprep.subr.mxu0 0.0
          %1010 = vmatpush1.msra.mxu0 %v982
          %1011 = vmatprep.subr.mxu0 0.0
          %1012 = vmatpush1.msra.mxu0 %v983
          %1013 = vmatprep.subr.mxu0 0.0
          %1014 = vmatpush1.msra.mxu0 %v984
          %1015 = vmatprep.subr.mxu0 0.0
          %1016 = vmatpush1.msra.mxu0 %v985
          %1017 = vmatprep.subr.mxu0 0.0
          %1018 = vmatpush1.msra.mxu0 %v986
          %1019 = vmatprep.subr.mxu0 0.0
          %1020 = vmatpush1.msra.mxu0 0.0
          %1021 = vmatprep.subr.mxu0 0.0
          %1022 = vmatpush1.msra.mxu0 0.0
          %1023 = vmatprep.subr.mxu0 0.0
          %1024 = vmatpush1.msra.mxu0 0.0
          %1025 = vmatprep.subr.mxu0 0.0
          %1026 = vmatpush1.msra.mxu0 0.0
          %1027 = vmatprep.subr.mxu0 0.0
          %1028 = vmatpush1.msra.mxu0 0.0
          %1029 = vmatprep.subr.mxu0 0.0
          %1030 = vmatpush1.msra.mxu0 0.0
          %1031 = vmatprep.subr.mxu0 0.0
          %1032 = vmatpush1.msra.mxu0 0.0
          %1033 = vmatprep.subr.mxu0 0.0
          %1034 = vmatpush1.msra.mxu0 0.0
          %1035 = vmatprep.subr.mxu0 0.0
          %1036 = vmatpush1.msra.mxu0 0.0
          %1037 = vmatprep.subr.mxu0 0.0
          %1038 = vmatpush1.msra.mxu0 0.0
          %1039 = vmatprep.subr.mxu0 0.0
          %1040 = vmatpush1.msra.mxu0 0.0
          %1041 = vmatprep.subr.mxu0 0.0
          %1042 = vmatpush1.msra.mxu0 0.0
          %1043 = vmatprep.subr.mxu0 0.0
          %1044 = vmatpush1.msra.mxu0 0.0
          %1045 = vmatprep.subr.mxu0 0.0
          %1046 = vmatpush1.msra.mxu0 0.0
          %1047 = vmatprep.subr.mxu0 0.0
          %1048 = vmatpush1.msra.mxu0 0.0
          %1049 = vmatprep.subr.mxu0 0.0
          %1050 = vmatpush1.msra.mxu0 0.0
          %1051 = vmatprep.mubr.f32.mxu0 0.0
          %1052 = vmatmul.mubr.f32.gmra.mrb[0].mxu0 %v955
          %v1053 = vpop.f32.mrb[0].mxu0
          %v1054 = vadd.f32 0.0, %v1053
          %v1055 = vpop.f32.mrb[0].mxu0
          %1056 = vmatprep.mubr.f32.mxu0 0.0
          %1057 = vmatmul.mubr.f32.gmra.mrb[0].mxu0 %v956
          %v1058 = vpop.f32.mrb[0].mxu0
          %v1059 = vadd.f32 0.0, %v1058
          %v1060 = vpop.f32.mrb[0].mxu0
          %1061 = vmatprep.mubr.f32.mxu0 0.0
          %1062 = vmatmul.mubr.f32.gmra.mrb[0].mxu0 %v957
          %v1063 = vpop.f32.mrb[0].mxu0
          %v1064 = vadd.f32 0.0, %v1063
          %v1065 = vpop.f32.mrb[0].mxu0
          %1066 = vmatprep.mubr.f32.mxu0 0.0
          %1067 = vmatmul.mubr.f32.gmra.mrb[0].mxu0 %v958
          %v1068 = vpop.f32.mrb[0].mxu0
          %v1069 = vadd.f32 0.0, %v1068
          %v1070 = vpop.f32.mrb[0].mxu0
          %1071 = vmatprep.mubr.f32.mxu0 0.0
          %1072 = vmatmul.mubr.f32.gmra.mrb[0].mxu0 %v959
          %v1073 = vpop.f32.mrb[0].mxu0
          %v1074 = vadd.f32 0.0, %v1073
          %v1075 = vpop.f32.mrb[0].mxu0
          %1076 = vmatprep.mubr.f32.mxu0 0.0
          %1077 = vmatmul.mubr.f32.gmra.mrb[0].mxu0 %v960
          %v1078 = vpop.f32.mrb[0].mxu0
          %v1079 = vadd.f32 0.0, %v1078
          %v1080 = vpop.f32.mrb[0].mxu0
          %1081 = vmatprep.mubr.f32.mxu0 0.0
          %1082 = vmatmul.mubr.f32.gmra.mrb[0].mxu0 %v961
          %v1083 = vpop.f32.mrb[0].mxu0
          %v1084 = vadd.f32 0.0, %v1083
          %v1085 = vpop.f32.mrb[0].mxu0
          %1086 = vmatprep.mubr.f32.mxu0 0.0
          %1087 = vmatmul.mubr.f32.gmra.mrb[0].mxu0 %v962
          %v1088 = vpop.f32.mrb[0].mxu0
          %v1089 = vadd.f32 0.0, %v1088
          %v1090 = vpop.f32.mrb[0].mxu0
          %1091 = vmatprep.mubr.f32.mxu0 0.0
          %1092 = vmatmul.mubr.f32.gmra.mrb[0].mxu0 %v963
          %v1093 = vpop.f32.mrb[0].mxu0
          %v1094 = vadd.f32 0.0, %v1093
          %v1095 = vpop.f32.mrb[0].mxu0
          %1096 = vmatprep.mubr.f32.mxu0 0.0
          %1097 = vmatmul.mubr.f32.gmra.mrb[0].mxu0 %v964
          %v1098 = vpop.f32.mrb[0].mxu0
          %v1099 = vadd.f32 0.0, %v1098
          %v1100 = vpop.f32.mrb[0].mxu0
          %1101 = vmatprep.mubr.f32.mxu0 0.0
          %1102 = vmatmul.mubr.f32.gmra.mrb[0].mxu0 %v965
          %v1103 = vpop.f32.mrb[0].mxu0
          %v1104 = vadd.f32 0.0, %v1103
          %v1105 = vpop.f32.mrb[0].mxu0
          %1106 = vmatprep.mubr.f32.mxu0 0.0
          %1107 = vmatmul.mubr.f32.gmra.mrb[0].mxu0 %v966
          %v1108 = vpop.f32.mrb[0].mxu0
          %v1109 = vadd.f32 0.0, %v1108
          %v1110 = vpop.f32.mrb[0].mxu0
          %1111 = vmatprep.mubr.f32.mxu0 0.0
          %1112 = vmatmul.mubr.f32.gmra.mrb[0].mxu0 %v967
          %v1113 = vpop.f32.mrb[0].mxu0
          %v1114 = vadd.f32 0.0, %v1113
          %v1115 = vpop.f32.mrb[0].mxu0
          %1116 = vmatprep.mubr.f32.mxu0 0.0
          %1117 = vmatmul.mubr.f32.gmra.mrb[0].mxu0 %v968
          %v1118 = vpop.f32.mrb[0].mxu0
          %v1119 = vadd.f32 0.0, %v1118
          %v1120 = vpop.f32.mrb[0].mxu0
          %1121 = vmatprep.mubr.f32.mxu0 0.0
          %1122 = vmatmul.mubr.f32.gmra.mrb[0].mxu0 %v969
          %v1123 = vpop.f32.mrb[0].mxu0
          %v1124 = vadd.f32 0.0, %v1123
          %v1125 = vpop.f32.mrb[0].mxu0
          %1126 = vmatprep.mubr.f32.mxu0 0.0
          %1127 = vmatmul.mubr.f32.gmra.mrb[0].mxu0 %v970
          %v1128 = vpop.f32.mrb[0].mxu0
          %v1129 = vadd.f32 0.0, %v1128
          %v1130 = vpop.f32.mrb[0].mxu0
          %1131 = vdwg.mxu0
          %v1132 = vld [vmem:[%s6 + $0x2] sm:$0x1]
          %v1133 = vlaneseq
          %v1134 = vshrl.u32 %v1133, 7
          %v1135 = vsub.s32 0, %v1134
          %v1136 = vrot.slane %v1132, %v1135
          %v1137 = vmul.f32 %v1054, %v1136
          %v1138 = vmul.f32 %v1059, %v1136
          %v1139 = vmul.f32 %v1064, %v1136
          %v1140 = vmul.f32 %v1069, %v1136
          %v1141 = vmul.f32 %v1074, %v1136
          %v1142 = vmul.f32 %v1079, %v1136
          %v1143 = vmul.f32 %v1084, %v1136
          %v1144 = vmul.f32 %v1089, %v1136
          %v1145 = vmul.f32 %v1094, %v1136
          %v1146 = vmul.f32 %v1099, %v1136
          %v1147 = vmul.f32 %v1104, %v1136
          %v1148 = vmul.f32 %v1109, %v1136
          %v1149 = vmul.f32 %v1114, %v1136
          %v1150 = vmul.f32 %v1119, %v1136
          %v1151 = vmul.f32 %v1124, %v1136
          %v1152 = vmul.f32 %v1129, %v1136
          %v1153 = vld [vmem:[%s6 + $0x3] sm:$0x1]
          %v1154 = vlaneseq
          %v1155 = vshrl.u32 %v1154, 7
          %v1156 = vsub.s32 0, %v1155
          %v1157 = vrot.slane %v1153, %v1156
          %v1158 = vadd.f32 %v1137, %v1157
          %v1159 = vadd.f32 %v1138, %v1157
          %v1160 = vadd.f32 %v1139, %v1157
          %v1161 = vadd.f32 %v1140, %v1157
          %v1162 = vadd.f32 %v1141, %v1157
          %v1163 = vadd.f32 %v1142, %v1157
          %v1164 = vadd.f32 %v1143, %v1157
          %v1165 = vadd.f32 %v1144, %v1157
          %v1166 = vadd.f32 %v1145, %v1157
          %v1167 = vadd.f32 %v1146, %v1157
          %v1168 = vadd.f32 %v1147, %v1157
          %v1169 = vadd.f32 %v1148, %v1157
          %v1170 = vadd.f32 %v1149, %v1157
          %v1171 = vadd.f32 %v1150, %v1157
          %v1172 = vadd.f32 %v1151, %v1157
          %v1173 = vadd.f32 %v1152, %v1157
          %v1174 = vmax.f32 %v1158, 0.0
          %v1175 = vmax.f32 %v1159, 0.0
          %v1176 = vmax.f32 %v1160, 0.0
          %v1177 = vmax.f32 %v1161, 0.0
          %v1178 = vmax.f32 %v1162, 0.0
          %v1179 = vmax.f32 %v1163, 0.0
          %v1180 = vmax.f32 %v1164, 0.0
          %v1181 = vmax.f32 %v1165, 0.0
          %v1182 = vmax.f32 %v1166, 0.0
          %v1183 = vmax.f32 %v1167, 0.0
          %v1184 = vmax.f32 %v1168, 0.0
          %v1185 = vmax.f32 %v1169, 0.0
          %v1186 = vmax.f32 %v1170, 0.0
          %v1187 = vmax.f32 %v1171, 0.0
          %v1188 = vmax.f32 %v1172, 0.0
          %v1189 = vmax.f32 %v1173, 0.0
          %v1190 = vld [vmem:[%s6 + $0x4] sm:$0x1]
          %v1191 = vlaneseq
          %v1192 = vshrl.u32 %v1191, 7
          %v1193 = vsub.s32 0, %v1192
          %v1194 = vrot.slane %v1190, %v1193
          %v1195 = vmul.f32 %v1174, %v1194
          %v1196 = vmul.f32 %v1175, %v1194
          %v1197 = vmul.f32 %v1176, %v1194
          %v1198 = vmul.f32 %v1177, %v1194
          %v1199 = vmul.f32 %v1178, %v1194
          %v1200 = vmul.f32 %v1179, %v1194
          %v1201 = vmul.f32 %v1180, %v1194
          %v1202 = vmul.f32 %v1181, %v1194
          %v1203 = vmul.f32 %v1182, %v1194
          %v1204 = vmul.f32 %v1183, %v1194
          %v1205 = vmul.f32 %v1184, %v1194
          %v1206 = vmul.f32 %v1185, %v1194
          %v1207 = vmul.f32 %v1186, %v1194
          %v1208 = vmul.f32 %v1187, %v1194
          %v1209 = vmul.f32 %v1188, %v1194
          %v1210 = vmul.f32 %v1189, %v1194
          %v1211 = vld [vmem:[%s6 + $0x5] sm:$0x1]
          %v1212 = vlaneseq
          %v1213 = vshrl.u32 %v1212, 7
          %v1214 = vsub.s32 0, %v1213
          %v1215 = vrot.slane %v1211, %v1214
          %v1216 = vadd.f32 %v1195, %v1215
          %v1217 = vadd.f32 %v1196, %v1215
          %v1218 = vadd.f32 %v1197, %v1215
          %v1219 = vadd.f32 %v1198, %v1215
          %v1220 = vadd.f32 %v1199, %v1215
          %v1221 = vadd.f32 %v1200, %v1215
          %v1222 = vadd.f32 %v1201, %v1215
          %v1223 = vadd.f32 %v1202, %v1215
          %v1224 = vadd.f32 %v1203, %v1215
          %v1225 = vadd.f32 %v1204, %v1215
          %v1226 = vadd.f32 %v1205, %v1215
          %v1227 = vadd.f32 %v1206, %v1215
          %v1228 = vadd.f32 %v1207, %v1215
          %v1229 = vadd.f32 %v1208, %v1215
          %v1230 = vadd.f32 %v1209, %v1215
          %v1231 = vadd.f32 %v1210, %v1215
          %v1232 = vmax.f32 %v1216, 0.0
          %v1233 = vmax.f32 %v1217, 0.0
          %v1234 = vmax.f32 %v1218, 0.0
          %v1235 = vmax.f32 %v1219, 0.0
          %v1236 = vmax.f32 %v1220, 0.0
          %v1237 = vmax.f32 %v1221, 0.0
          %v1238 = vmax.f32 %v1222, 0.0
          %v1239 = vmax.f32 %v1223, 0.0
          %v1240 = vmax.f32 %v1224, 0.0
          %v1241 = vmax.f32 %v1225, 0.0
          %v1242 = vmax.f32 %v1226, 0.0
          %v1243 = vmax.f32 %v1227, 0.0
          %v1244 = vmax.f32 %v1228, 0.0
          %v1245 = vmax.f32 %v1229, 0.0
          %v1246 = vmax.f32 %v1230, 0.0
          %v1247 = vmax.f32 %v1231, 0.0
          %1248 = vst [vmem:[%s442] sm:$0xff] %v1232
          %1249 = vst [vmem:[%s442 + $0x8] sm:$0xff] %v1233
          %1250 = vst [vmem:[%s442 + $0x10] sm:$0xff] %v1234
          %1251 = vst [vmem:[%s442 + $0x18] sm:$0xff] %v1235
          %1252 = vst [vmem:[%s442 + $0x20] sm:$0xff] %v1236
          %1253 = vst [vmem:[%s442 + $0x28] sm:$0xff] %v1237
          %1254 = vst [vmem:[%s442 + $0x30] sm:$0xff] %v1238
          %1255 = vst [vmem:[%s442 + $0x38] sm:$0xff] %v1239
          %1256 = vst [vmem:[%s442 + $0x40] sm:$0xff] %v1240
          %1257 = vst [vmem:[%s442 + $0x48] sm:$0xff] %v1241
          %1258 = vst [vmem:[%s442 + $0x50] sm:$0xff] %v1242
          %1259 = vst [vmem:[%s442 + $0x58] sm:$0xff] %v1243
          %1260 = vst [vmem:[%s442 + $0x60] sm:$0xff] %v1244
          %1261 = vst [vmem:[%s442 + $0x68] sm:$0xff] %v1245
          %1262 = vst [vmem:[%s442 + $0x70] sm:$0xff] %v1246
          %1263 = vst [vmem:[%s442 + $0x78] sm:$0xff] %v1247
        $region97: #{gin_forward.2} parent=84 // pred_fallthru
          _
        %s1264 = smul.u32 16, %s23
        %p1265 = scmp.lt.s32.totalorder %s1264, 31
        %s1266 = scalar_select %p1265, %s1264, 31
        %s1267 = smul.addr %s1266, 8
        %s1268 = scalar_lea.vmem %s7, %s1267
        // Predicated region
        $region98: #{gin_forward.2} parent=84 // pred_check
          %p1269 = pneg %p213
        $region99: #{gin_forward.2} parent=84 // pred_check_branch
          %1271 = sbr.rel (%p1269) target = $region101
        $region100: #{gin_forward.2} parent=84 // pred_region
          %s1272 = smul.u32 16, %s23
        $region101: #{gin_forward.2} parent=84 // pred_fallthru
          _
      $region85: #{gin_forward.2} parent=5 // pred_fallthru
        _
      %p1273 = scmp.le.s32.totalorder 2, %s14
      // Predicated region
      $region102: #{gin_forward.2} parent=5 // pred_check
        %p1274 = pneg %p1273
      $region103: #{gin_forward.2} parent=5 // pred_check_branch
        %1276 = sbr.rel (%p1274) target = $region105
      $region104: #{gin_forward.2} parent=5 // pred_region
        %s1277 = ssub.s32 %s14, 2
        // Predicated region
        $region106: #{gin_forward.2} parent=104 // pred_check
          %p1278 = pneg %p219
        $region107: #{gin_forward.2} parent=104 // pred_check_branch
          %1280 = sbr.rel (%p1278) target = $region109
        $region108: #{gin_forward.2} parent=104 // pred_region
          %s1281 = smul.u32 16, %s25
          %p1282 = scmp.lt.s32.totalorder %s1281, 31
          %s1283 = scalar_select %p1282, %s1281, 31
          %s1284 = smul.addr %s1283, 8
          %s1285 = scalar_lea.vmem %s7, %s1284
        $region109: #{gin_forward.2} parent=104 // pred_fallthru
          _
      $region105: #{gin_forward.2} parent=5 // pred_fallthru
        _
    $region6: #{gin_forward.2} parent=1 // loop_footer
      %s18 = sadd.s32 1, %s14
    $region7: #{gin_forward.2} parent=1 // loop_footer_branch
      %13 = sbr.rel target = $region3
    $region8: #{gin_forward.2} parent=1 // loop_exit
      _

</llo_original>
